<compile_context>
chip_gen: v7x
topology: tpu7x:2x2x1
jax: 0.10.0
libtpu: 0.0.40
codegen_flags: <defaults>
</compile_context>

<pallas_src>
import functools

import jax
import jax.numpy as jnp
from jax.experimental import pallas as pl
from jax.experimental.pallas import tpu as pltpu


def _residual_stack_kernel(dilations, skip_size,
                           x_ref, wd_ref, wrs_ref, brs_ref,
                           skips_ref, cur_ref):
    """One batch element of the whole residual stack (blocks unrolled).

    x_ref     : (1, T, C)            channels-last residual input
    wd_ref    : (nb, 2C, C)          dilated-conv taps, concatenated along C_in
    wrs_ref   : (nb, C, C+Csk)       1x1 residual|skip weights, concat along C_out
    brs_ref   : (nb, 1, C+Csk)       1x1 residual|skip bias
    skips_ref : (nb, 1, Csk, skipSize)  stacked skips (PyTorch layout)
    cur_ref   : (T, C) VMEM scratch holding the residual state
    """
    T, C = cur_ref.shape
    cur_ref[...] = x_ref[0]
    length = T                                    # statically tracked valid rows
    for i, d in enumerate(dilations):
        cur = cur_ref[...]
        # shifted[t] = cur[t + d] for t < length - d (wrapped tail never read)
        shifted = jnp.roll(cur, -d, axis=0)

        # Fused 2-tap dilated causal conv: one MXU pass over concatenated taps.
        xcat = jnp.concatenate([cur, shifted], axis=-1)               # (T, 2C)
        z = jnp.dot(xcat, wd_ref[i], preferred_element_type=jnp.float32)

        # gated = tanh(z) * sigmoid(z) == (1 - e) / (1 + e^2), e = exp(-z)
        e = jnp.exp(-z)
        gated = (1.0 - e) / (1.0 + e * e)

        # Fused 1x1 residual + skip conv: one MXU pass, lane-slice afterwards.
        rs = jnp.dot(gated, wrs_ref[i],
                     preferred_element_type=jnp.float32) + brs_ref[i]

        # Residual connection against the time-aligned input slice (== shifted).
        cur_ref[...] = rs[:, :C] + shifted
        length -= d

        # Last skip_size valid steps, stored as (Csk, skipSize) = torch layout.
        skips_ref[i, 0] = rs[length - skip_size:length, C:].T


def _padded_bytes(shape, itemsize=4):
    """Approximate VMEM footprint of an f32 array padded to (8, 128) tiles."""
    lead = 1
    for s in shape[:-2]:
        lead *= s
    sub = -(-shape[-2] // 8) * 8
    lane = -(-shape[-1] // 128) * 128
    return lead * sub * lane * itemsize


def residual_stack_forward(x_nct, wd, wres, bres, wskip, bskip,
                           dilations, skip_size):
    """x_nct: (B, chanRes, T) PyTorch NCW layout.
    Returns (num_blocks, B, chanSkip, skipSize), like torch.stack(skips)."""
    dilations = tuple(int(d) for d in dilations)
    skip_size = int(skip_size)
    nb = len(dilations)
    B, C, T = x_nct.shape
    Csk = wskip.shape[-1]
    # The deepest block must still have >= skip_size valid steps.
    assert T - sum(dilations) >= skip_size, (T, dilations, skip_size)

    # Channels-last once; every per-block conv becomes a matmul over channels.
    x = jnp.transpose(x_nct, (0, 2, 1)).astype(jnp.float32)          # (B, T, C)

    # One-time weight fusion (tiny tensors): taps along C_in, res|skip along C_out.
    wd_cat = jnp.concatenate([wd[:, 0], wd[:, 1]], axis=1)           # (nb, 2C, C)
    w_rs = jnp.concatenate([wres, wskip], axis=-1)                   # (nb, C, C+Csk)
    b_rs = jnp.concatenate([bres, bskip], axis=-1)                   # (nb, 1, C+Csk)

    # Scoped-VMEM budget: double-buffered blocks + scratch + unrolled temporaries.
    est = (2 * _padded_bytes((1, T, C))
           + _padded_bytes((nb, 2 * C, C))
           + _padded_bytes((nb, C, C + Csk))
           + _padded_bytes((nb, 1, C + Csk))
           + 2 * _padded_bytes((nb, 1, Csk, skip_size))
           + _padded_bytes((T, C))
           + 4 * _padded_bytes((T, 2 * C)))
    vmem_limit = int(min(100 * 1024 * 1024, max(32 * 1024 * 1024, 4 * est)))

    kernel = functools.partial(_residual_stack_kernel, dilations, skip_size)
    skips = pl.pallas_call(
        kernel,
        out_shape=jax.ShapeDtypeStruct((nb, B, Csk, skip_size), jnp.float32),
        grid=(B,),
        in_specs=[
            pl.BlockSpec((1, T, C), lambda b: (b, 0, 0)),
            pl.BlockSpec((nb, 2 * C, C), lambda b: (0, 0, 0)),
            pl.BlockSpec((nb, C, C + Csk), lambda b: (0, 0, 0)),
            pl.BlockSpec((nb, 1, C + Csk), lambda b: (0, 0, 0)),
        ],
        out_specs=pl.BlockSpec((nb, 1, Csk, skip_size), lambda b: (0, b, 0, 0)),
        scratch_shapes=[pltpu.VMEM((T, C), jnp.float32)],
        compiler_params=pltpu.CompilerParams(
            dimension_semantics=("parallel",),
            vmem_limit_bytes=vmem_limit),
    )(x, wd_cat, w_rs, b_rs)
    return skips


def residual_stack_reference(x_nct, wd, wres, bres, wskip, bskip,
                             dilations, skip_size):
    """Pure-JAX reference mirroring the PyTorch module, for verification."""
    cur = jnp.transpose(x_nct, (0, 2, 1)).astype(jnp.float32)
    skips = []
    for i, d in enumerate(dilations):
        t_out = cur.shape[1] - d
        x0 = cur[:, :t_out, :]
        x1 = cur[:, d:, :]
        z = x0 @ wd[i, 0] + x1 @ wd[i, 1]
        gated = jnp.tanh(z) * jax.nn.sigmoid(z)
        cur = gated @ wres[i] + bres[i] + x1
        skip = gated @ wskip[i] + bskip[i]
        skips.append(skip[:, t_out - skip_size:, :])
    return jnp.transpose(jnp.stack(skips), (0, 1, 3, 2))


def build_dilations(layer_size, stack_size):
    return [2 ** l for _ in range(stack_size) for l in range(layer_size)]


if __name__ == "__main__":
    # Small, deterministic configuration
    layer_size = 3          # dilations 1, 2, 4
    stack_size = 2          # two stacks -> 6 residual blocks
    chan_res = 4
    chan_skip = 8
    skip_size = 8
    B = 2
    T = 24                  # total dilation shrink = 14, final length 10 >= skipSize

    dilations = build_dilations(layer_size, stack_size)
    nb = len(dilations)

    key = jax.random.PRNGKey(0)
    kx, kwd, kwr, kbr, kws, kbs = jax.random.split(key, 6)

    x = jax.random.normal(kx, (B, chan_res, T), dtype=jnp.float32)       # NCW input
    # weights already in (C_in, C_out) orientation (== torch weight[:, :, k].T)
    wd = 0.3 * jax.random.normal(kwd, (nb, 2, chan_res, chan_res), jnp.float32)
    wres = 0.3 * jax.random.normal(kwr, (nb, chan_res, chan_res), jnp.float32)
    bres = 0.1 * jax.random.normal(kbr, (nb, 1, chan_res), jnp.float32)
    wskip = 0.3 * jax.random.normal(kws, (nb, chan_res, chan_skip), jnp.float32)
    bskip = 0.1 * jax.random.normal(kbs, (nb, 1, chan_skip), jnp.float32)

    out = residual_stack_forward(x, wd, wres, bres, wskip, bskip,
                                 dilations, skip_size)
    out = jax.block_until_ready(out)

    ref = residual_stack_reference(x, wd, wres, bres, wskip, bskip,
                                   dilations, skip_size)
    assert out.shape == (nb, B, chan_skip, skip_size), out.shape
    err = float(jnp.max(jnp.abs(out - ref)))
    assert jnp.allclose(out, ref, atol=1e-4, rtol=1e-4), f"mismatch vs reference, max abs err={err}"

    print("KERNEL_OK")
</pallas_src>

<mosaic_0001>
module attributes {stable_mosaic.version = 11 : i64} {
  func.func @_residual_stack_kernel(%arg0: i32, %arg1: memref<1x24x4xf32, #tpu.memory_space<vmem>>, %arg2: memref<6x8x4xf32, #tpu.memory_space<vmem>>, %arg3: memref<6x4x12xf32, #tpu.memory_space<vmem>>, %arg4: memref<6x1x12xf32, #tpu.memory_space<vmem>>, %arg5: memref<6x1x8x8xf32, #tpu.memory_space<vmem>>, %arg6: memref<24x4xf32, #tpu.memory_space<vmem>>) attributes {dimension_semantics = [#tpu.dimension_semantics<parallel>], iteration_bounds = array<i64: 2>, scalar_prefetch = 0 : i64, scratch_operands = 1 : i64, tpu.core_type = #tpu.core_type<tc>, window_params = [{transform_indices = @transform_0, window_bounds = array<i64: 1, 24, 4>}, {pipeline_mode = #tpu.pipeline_mode<synchronous>, transform_indices = @transform_1, window_bounds = array<i64: 6, 8, 4>}, {pipeline_mode = #tpu.pipeline_mode<synchronous>, transform_indices = @transform_2, window_bounds = array<i64: 6, 4, 12>}, {pipeline_mode = #tpu.pipeline_mode<synchronous>, transform_indices = @transform_3, window_bounds = array<i64: 6, 1, 12>}, {transform_indices = @transform_4, window_bounds = array<i64: 6, 1, 8, 8>}]} {
    %c0 = arith.constant 0 : index
    %c0_0 = arith.constant 0 : index
    %c0_1 = arith.constant 0 : index
    %0 = vector.load %arg1[%c0, %c0_0, %c0_1] : memref<1x24x4xf32, #tpu.memory_space<vmem>>, vector<1x24x4xf32>
    %1 = vector.shape_cast %0 : vector<1x24x4xf32> to vector<24x4xf32>
    %c0_2 = arith.constant 0 : index
    %c0_3 = arith.constant 0 : index
    %2 = vector.load %arg6[%c0_2, %c0_3] : memref<24x4xf32, #tpu.memory_space<vmem>>, vector<24x4xf32>
    tpu.vector_store %arg6[%c0_2, %c0_3], %1 {strides = array<i32>} : memref<24x4xf32, #tpu.memory_space<vmem>>, vector<24x4xf32>,
    %c0_4 = arith.constant 0 : index
    %c0_5 = arith.constant 0 : index
    %3 = vector.load %arg6[%c0_4, %c0_5] : memref<24x4xf32, #tpu.memory_space<vmem>>, vector<24x4xf32>
    %4 = vector.extract_strided_slice %3 {offsets = [1, 0], sizes = [23, 4], strides = [1, 1]} : vector<24x4xf32> to vector<23x4xf32>
    %5 = vector.extract_strided_slice %3 {offsets = [0, 0], sizes = [1, 4], strides = [1, 1]} : vector<24x4xf32> to vector<1x4xf32>
    %6 = tpu.concatenate %4, %5 in 0 : vector<23x4xf32>, vector<1x4xf32> -> vector<24x4xf32>
    %7 = tpu.concatenate %3, %6 in 1 : vector<24x4xf32>, vector<24x4xf32> -> vector<24x8xf32>
    %c0_6 = arith.constant 0 : index
    %c0_7 = arith.constant 0 : index
    %c0_8 = arith.constant 0 : index
    %8 = vector.load %arg2[%c0_6, %c0_7, %c0_8] : memref<6x8x4xf32, #tpu.memory_space<vmem>>, vector<1x8x4xf32>
    %9 = vector.shape_cast %8 : vector<1x8x4xf32> to vector<8x4xf32>
    %cst = arith.constant dense<0.000000e+00> : vector<24x4xf32>
    %10 = tpu.matmul %7, %9, %cst {dimension_numbers = #tpu.dot_dimension_numbers<[1], [0], [0], [1], [0, 0, 1, 1], [], []>} : vector<24x8xf32>, vector<8x4xf32>, vector<24x4xf32> -> vector<24x4xf32>
    %cst_9 = arith.constant 0.000000e+00 : f32
    %11 = vector.broadcast %cst_9 : f32 to vector<24x4xf32>
    %12 = arith.subf %11, %10 : vector<24x4xf32>
    %13 = math.exp %12 : vector<24x4xf32>
    %cst_10 = arith.constant 1.000000e+00 : f32
    %14 = vector.broadcast %cst_10 : f32 to vector<24x4xf32>
    %15 = arith.subf %14, %13 : vector<24x4xf32>
    %16 = arith.mulf %13, %13 : vector<24x4xf32>
    %cst_11 = arith.constant 1.000000e+00 : f32
    %17 = vector.broadcast %cst_11 : f32 to vector<24x4xf32>
    %18 = arith.addf %17, %16 : vector<24x4xf32>
    %19 = arith.divf %15, %18 : vector<24x4xf32>
    %c0_12 = arith.constant 0 : index
    %c0_13 = arith.constant 0 : index
    %c0_14 = arith.constant 0 : index
    %20 = vector.load %arg3[%c0_12, %c0_13, %c0_14] : memref<6x4x12xf32, #tpu.memory_space<vmem>>, vector<1x4x12xf32>
    %21 = vector.shape_cast %20 : vector<1x4x12xf32> to vector<4x12xf32>
    %cst_15 = arith.constant dense<0.000000e+00> : vector<24x12xf32>
    %22 = tpu.matmul %19, %21, %cst_15 {dimension_numbers = #tpu.dot_dimension_numbers<[1], [0], [0], [1], [0, 0, 1, 1], [], []>} : vector<24x4xf32>, vector<4x12xf32>, vector<24x12xf32> -> vector<24x12xf32>
    %c0_16 = arith.constant 0 : index
    %c0_17 = arith.constant 0 : index
    %c0_18 = arith.constant 0 : index
    %23 = vector.load %arg4[%c0_16, %c0_17, %c0_18] : memref<6x1x12xf32, #tpu.memory_space<vmem>>, vector<1x1x12xf32>
    %24 = vector.shape_cast %23 : vector<1x1x12xf32> to vector<1x12xf32>
    %25 = vector.broadcast %24 : vector<1x12xf32> to vector<24x12xf32>
    %26 = arith.addf %22, %25 : vector<24x12xf32>
    %27 = vector.extract_strided_slice %26 {offsets = [0, 0], sizes = [24, 4], strides = [1, 1]} : vector<24x12xf32> to vector<24x4xf32>
    %28 = arith.addf %27, %6 : vector<24x4xf32>
    %c0_19 = arith.constant 0 : index
    %c0_20 = arith.constant 0 : index
    %29 = vector.load %arg6[%c0_19, %c0_20] : memref<24x4xf32, #tpu.memory_space<vmem>>, vector<24x4xf32>
    tpu.vector_store %arg6[%c0_19, %c0_20], %28 {strides = array<i32>} : memref<24x4xf32, #tpu.memory_space<vmem>>, vector<24x4xf32>,
    %30 = vector.extract_strided_slice %26 {offsets = [15, 4], sizes = [8, 8], strides = [1, 1]} : vector<24x12xf32> to vector<8x8xf32>
    %31 = tpu.transpose %30, [1, 0] : vector<8x8xf32> -> vector<8x8xf32>
    %c0_21 = arith.constant 0 : index
    %c0_22 = arith.constant 0 : index
    %c0_23 = arith.constant 0 : index
    %c0_24 = arith.constant 0 : index
    %32 = vector.load %arg5[%c0_21, %c0_22, %c0_23, %c0_24] : memref<6x1x8x8xf32, #tpu.memory_space<vmem>>, vector<1x1x8x8xf32>
    %33 = vector.shape_cast %32 : vector<1x1x8x8xf32> to vector<8x8xf32>
    %34 = vector.shape_cast %31 : vector<8x8xf32> to vector<1x1x8x8xf32>
    tpu.vector_store %arg5[%c0_21, %c0_22, %c0_23, %c0_24], %34 {strides = array<i32>} : memref<6x1x8x8xf32, #tpu.memory_space<vmem>>, vector<1x1x8x8xf32>,
    %c0_25 = arith.constant 0 : index
    %c0_26 = arith.constant 0 : index
    %35 = vector.load %arg6[%c0_25, %c0_26] : memref<24x4xf32, #tpu.memory_space<vmem>>, vector<24x4xf32>
    %36 = vector.extract_strided_slice %35 {offsets = [2, 0], sizes = [22, 4], strides = [1, 1]} : vector<24x4xf32> to vector<22x4xf32>
    %37 = vector.extract_strided_slice %35 {offsets = [0, 0], sizes = [2, 4], strides = [1, 1]} : vector<24x4xf32> to vector<2x4xf32>
    %38 = tpu.concatenate %36, %37 in 0 : vector<22x4xf32>, vector<2x4xf32> -> vector<24x4xf32>
    %39 = tpu.concatenate %35, %38 in 1 : vector<24x4xf32>, vector<24x4xf32> -> vector<24x8xf32>
    %c1 = arith.constant 1 : index
    %c0_27 = arith.constant 0 : index
    %c0_28 = arith.constant 0 : index
    %40 = vector.load %arg2[%c1, %c0_27, %c0_28] : memref<6x8x4xf32, #tpu.memory_space<vmem>>, vector<1x8x4xf32>
    %41 = vector.shape_cast %40 : vector<1x8x4xf32> to vector<8x4xf32>
    %cst_29 = arith.constant dense<0.000000e+00> : vector<24x4xf32>
    %42 = tpu.matmul %39, %41, %cst_29 {dimension_numbers = #tpu.dot_dimension_numbers<[1], [0], [0], [1], [0, 0, 1, 1], [], []>} : vector<24x8xf32>, vector<8x4xf32>, vector<24x4xf32> -> vector<24x4xf32>
    %cst_30 = arith.constant 0.000000e+00 : f32
    %43 = vector.broadcast %cst_30 : f32 to vector<24x4xf32>
    %44 = arith.subf %43, %42 : vector<24x4xf32>
    %45 = math.exp %44 : vector<24x4xf32>
    %cst_31 = arith.constant 1.000000e+00 : f32
    %46 = vector.broadcast %cst_31 : f32 to vector<24x4xf32>
    %47 = arith.subf %46, %45 : vector<24x4xf32>
    %48 = arith.mulf %45, %45 : vector<24x4xf32>
    %cst_32 = arith.constant 1.000000e+00 : f32
    %49 = vector.broadcast %cst_32 : f32 to vector<24x4xf32>
    %50 = arith.addf %49, %48 : vector<24x4xf32>
    %51 = arith.divf %47, %50 : vector<24x4xf32>
    %c1_33 = arith.constant 1 : index
    %c0_34 = arith.constant 0 : index
    %c0_35 = arith.constant 0 : index
    %52 = vector.load %arg3[%c1_33, %c0_34, %c0_35] : memref<6x4x12xf32, #tpu.memory_space<vmem>>, vector<1x4x12xf32>
    %53 = vector.shape_cast %52 : vector<1x4x12xf32> to vector<4x12xf32>
    %cst_36 = arith.constant dense<0.000000e+00> : vector<24x12xf32>
    %54 = tpu.matmul %51, %53, %cst_36 {dimension_numbers = #tpu.dot_dimension_numbers<[1], [0], [0], [1], [0, 0, 1, 1], [], []>} : vector<24x4xf32>, vector<4x12xf32>, vector<24x12xf32> -> vector<24x12xf32>
    %c1_37 = arith.constant 1 : index
    %c0_38 = arith.constant 0 : index
    %c0_39 = arith.constant 0 : index
    %55 = vector.load %arg4[%c1_37, %c0_38, %c0_39] : memref<6x1x12xf32, #tpu.memory_space<vmem>>, vector<1x1x12xf32>
    %56 = vector.shape_cast %55 : vector<1x1x12xf32> to vector<1x12xf32>
    %57 = vector.broadcast %56 : vector<1x12xf32> to vector<24x12xf32>
    %58 = arith.addf %54, %57 : vector<24x12xf32>
    %59 = vector.extract_strided_slice %58 {offsets = [0, 0], sizes = [24, 4], strides = [1, 1]} : vector<24x12xf32> to vector<24x4xf32>
    %60 = arith.addf %59, %38 : vector<24x4xf32>
    %c0_40 = arith.constant 0 : index
    %c0_41 = arith.constant 0 : index
    %61 = vector.load %arg6[%c0_40, %c0_41] : memref<24x4xf32, #tpu.memory_space<vmem>>, vector<24x4xf32>
    tpu.vector_store %arg6[%c0_40, %c0_41], %60 {strides = array<i32>} : memref<24x4xf32, #tpu.memory_space<vmem>>, vector<24x4xf32>,
    %62 = vector.extract_strided_slice %58 {offsets = [13, 4], sizes = [8, 8], strides = [1, 1]} : vector<24x12xf32> to vector<8x8xf32>
    %63 = tpu.transpose %62, [1, 0] : vector<8x8xf32> -> vector<8x8xf32>
    %c1_42 = arith.constant 1 : index
    %c0_43 = arith.constant 0 : index
    %c0_44 = arith.constant 0 : index
    %c0_45 = arith.constant 0 : index
    %64 = vector.load %arg5[%c1_42, %c0_43, %c0_44, %c0_45] : memref<6x1x8x8xf32, #tpu.memory_space<vmem>>, vector<1x1x8x8xf32>
    %65 = vector.shape_cast %64 : vector<1x1x8x8xf32> to vector<8x8xf32>
    %66 = vector.shape_cast %63 : vector<8x8xf32> to vector<1x1x8x8xf32>
    tpu.vector_store %arg5[%c1_42, %c0_43, %c0_44, %c0_45], %66 {strides = array<i32>} : memref<6x1x8x8xf32, #tpu.memory_space<vmem>>, vector<1x1x8x8xf32>,
    %c0_46 = arith.constant 0 : index
    %c0_47 = arith.constant 0 : index
    %67 = vector.load %arg6[%c0_46, %c0_47] : memref<24x4xf32, #tpu.memory_space<vmem>>, vector<24x4xf32>
    %68 = vector.extract_strided_slice %67 {offsets = [4, 0], sizes = [20, 4], strides = [1, 1]} : vector<24x4xf32> to vector<20x4xf32>
    %69 = vector.extract_strided_slice %67 {offsets = [0, 0], sizes = [4, 4], strides = [1, 1]} : vector<24x4xf32> to vector<4x4xf32>
    %70 = tpu.concatenate %68, %69 in 0 : vector<20x4xf32>, vector<4x4xf32> -> vector<24x4xf32>
    %71 = tpu.concatenate %67, %70 in 1 : vector<24x4xf32>, vector<24x4xf32> -> vector<24x8xf32>
    %c2 = arith.constant 2 : index
    %c0_48 = arith.constant 0 : index
    %c0_49 = arith.constant 0 : index
    %72 = vector.load %arg2[%c2, %c0_48, %c0_49] : memref<6x8x4xf32, #tpu.memory_space<vmem>>, vector<1x8x4xf32>
    %73 = vector.shape_cast %72 : vector<1x8x4xf32> to vector<8x4xf32>
    %cst_50 = arith.constant dense<0.000000e+00> : vector<24x4xf32>
    %74 = tpu.matmul %71, %73, %cst_50 {dimension_numbers = #tpu.dot_dimension_numbers<[1], [0], [0], [1], [0, 0, 1, 1], [], []>} : vector<24x8xf32>, vector<8x4xf32>, vector<24x4xf32> -> vector<24x4xf32>
    %cst_51 = arith.constant 0.000000e+00 : f32
    %75 = vector.broadcast %cst_51 : f32 to vector<24x4xf32>
    %76 = arith.subf %75, %74 : vector<24x4xf32>
    %77 = math.exp %76 : vector<24x4xf32>
    %cst_52 = arith.constant 1.000000e+00 : f32
    %78 = vector.broadcast %cst_52 : f32 to vector<24x4xf32>
    %79 = arith.subf %78, %77 : vector<24x4xf32>
    %80 = arith.mulf %77, %77 : vector<24x4xf32>
    %cst_53 = arith.constant 1.000000e+00 : f32
    %81 = vector.broadcast %cst_53 : f32 to vector<24x4xf32>
    %82 = arith.addf %81, %80 : vector<24x4xf32>
    %83 = arith.divf %79, %82 : vector<24x4xf32>
    %c2_54 = arith.constant 2 : index
    %c0_55 = arith.constant 0 : index
    %c0_56 = arith.constant 0 : index
    %84 = vector.load %arg3[%c2_54, %c0_55, %c0_56] : memref<6x4x12xf32, #tpu.memory_space<vmem>>, vector<1x4x12xf32>
    %85 = vector.shape_cast %84 : vector<1x4x12xf32> to vector<4x12xf32>
    %cst_57 = arith.constant dense<0.000000e+00> : vector<24x12xf32>
    %86 = tpu.matmul %83, %85, %cst_57 {dimension_numbers = #tpu.dot_dimension_numbers<[1], [0], [0], [1], [0, 0, 1, 1], [], []>} : vector<24x4xf32>, vector<4x12xf32>, vector<24x12xf32> -> vector<24x12xf32>
    %c2_58 = arith.constant 2 : index
    %c0_59 = arith.constant 0 : index
    %c0_60 = arith.constant 0 : index
    %87 = vector.load %arg4[%c2_58, %c0_59, %c0_60] : memref<6x1x12xf32, #tpu.memory_space<vmem>>, vector<1x1x12xf32>
    %88 = vector.shape_cast %87 : vector<1x1x12xf32> to vector<1x12xf32>
    %89 = vector.broadcast %88 : vector<1x12xf32> to vector<24x12xf32>
    %90 = arith.addf %86, %89 : vector<24x12xf32>
    %91 = vector.extract_strided_slice %90 {offsets = [0, 0], sizes = [24, 4], strides = [1, 1]} : vector<24x12xf32> to vector<24x4xf32>
    %92 = arith.addf %91, %70 : vector<24x4xf32>
    %c0_61 = arith.constant 0 : index
    %c0_62 = arith.constant 0 : index
    %93 = vector.load %arg6[%c0_61, %c0_62] : memref<24x4xf32, #tpu.memory_space<vmem>>, vector<24x4xf32>
    tpu.vector_store %arg6[%c0_61, %c0_62], %92 {strides = array<i32>} : memref<24x4xf32, #tpu.memory_space<vmem>>, vector<24x4xf32>,
    %94 = vector.extract_strided_slice %90 {offsets = [9, 4], sizes = [8, 8], strides = [1, 1]} : vector<24x12xf32> to vector<8x8xf32>
    %95 = tpu.transpose %94, [1, 0] : vector<8x8xf32> -> vector<8x8xf32>
    %c2_63 = arith.constant 2 : index
    %c0_64 = arith.constant 0 : index
    %c0_65 = arith.constant 0 : index
    %c0_66 = arith.constant 0 : index
    %96 = vector.load %arg5[%c2_63, %c0_64, %c0_65, %c0_66] : memref<6x1x8x8xf32, #tpu.memory_space<vmem>>, vector<1x1x8x8xf32>
    %97 = vector.shape_cast %96 : vector<1x1x8x8xf32> to vector<8x8xf32>
    %98 = vector.shape_cast %95 : vector<8x8xf32> to vector<1x1x8x8xf32>
    tpu.vector_store %arg5[%c2_63, %c0_64, %c0_65, %c0_66], %98 {strides = array<i32>} : memref<6x1x8x8xf32, #tpu.memory_space<vmem>>, vector<1x1x8x8xf32>,
    %c0_67 = arith.constant 0 : index
    %c0_68 = arith.constant 0 : index
    %99 = vector.load %arg6[%c0_67, %c0_68] : memref<24x4xf32, #tpu.memory_space<vmem>>, vector<24x4xf32>
    %100 = vector.extract_strided_slice %99 {offsets = [1, 0], sizes = [23, 4], strides = [1, 1]} : vector<24x4xf32> to vector<23x4xf32>
    %101 = vector.extract_strided_slice %99 {offsets = [0, 0], sizes = [1, 4], strides = [1, 1]} : vector<24x4xf32> to vector<1x4xf32>
    %102 = tpu.concatenate %100, %101 in 0 : vector<23x4xf32>, vector<1x4xf32> -> vector<24x4xf32>
    %103 = tpu.concatenate %99, %102 in 1 : vector<24x4xf32>, vector<24x4xf32> -> vector<24x8xf32>
    %c3 = arith.constant 3 : index
    %c0_69 = arith.constant 0 : index
    %c0_70 = arith.constant 0 : index
    %104 = vector.load %arg2[%c3, %c0_69, %c0_70] : memref<6x8x4xf32, #tpu.memory_space<vmem>>, vector<1x8x4xf32>
    %105 = vector.shape_cast %104 : vector<1x8x4xf32> to vector<8x4xf32>
    %cst_71 = arith.constant dense<0.000000e+00> : vector<24x4xf32>
    %106 = tpu.matmul %103, %105, %cst_71 {dimension_numbers = #tpu.dot_dimension_numbers<[1], [0], [0], [1], [0, 0, 1, 1], [], []>} : vector<24x8xf32>, vector<8x4xf32>, vector<24x4xf32> -> vector<24x4xf32>
    %cst_72 = arith.constant 0.000000e+00 : f32
    %107 = vector.broadcast %cst_72 : f32 to vector<24x4xf32>
    %108 = arith.subf %107, %106 : vector<24x4xf32>
    %109 = math.exp %108 : vector<24x4xf32>
    %cst_73 = arith.constant 1.000000e+00 : f32
    %110 = vector.broadcast %cst_73 : f32 to vector<24x4xf32>
    %111 = arith.subf %110, %109 : vector<24x4xf32>
    %112 = arith.mulf %109, %109 : vector<24x4xf32>
    %cst_74 = arith.constant 1.000000e+00 : f32
    %113 = vector.broadcast %cst_74 : f32 to vector<24x4xf32>
    %114 = arith.addf %113, %112 : vector<24x4xf32>
    %115 = arith.divf %111, %114 : vector<24x4xf32>
    %c3_75 = arith.constant 3 : index
    %c0_76 = arith.constant 0 : index
    %c0_77 = arith.constant 0 : index
    %116 = vector.load %arg3[%c3_75, %c0_76, %c0_77] : memref<6x4x12xf32, #tpu.memory_space<vmem>>, vector<1x4x12xf32>
    %117 = vector.shape_cast %116 : vector<1x4x12xf32> to vector<4x12xf32>
    %cst_78 = arith.constant dense<0.000000e+00> : vector<24x12xf32>
    %118 = tpu.matmul %115, %117, %cst_78 {dimension_numbers = #tpu.dot_dimension_numbers<[1], [0], [0], [1], [0, 0, 1, 1], [], []>} : vector<24x4xf32>, vector<4x12xf32>, vector<24x12xf32> -> vector<24x12xf32>
    %c3_79 = arith.constant 3 : index
    %c0_80 = arith.constant 0 : index
    %c0_81 = arith.constant 0 : index
    %119 = vector.load %arg4[%c3_79, %c0_80, %c0_81] : memref<6x1x12xf32, #tpu.memory_space<vmem>>, vector<1x1x12xf32>
    %120 = vector.shape_cast %119 : vector<1x1x12xf32> to vector<1x12xf32>
    %121 = vector.broadcast %120 : vector<1x12xf32> to vector<24x12xf32>
    %122 = arith.addf %118, %121 : vector<24x12xf32>
    %123 = vector.extract_strided_slice %122 {offsets = [0, 0], sizes = [24, 4], strides = [1, 1]} : vector<24x12xf32> to vector<24x4xf32>
    %124 = arith.addf %123, %102 : vector<24x4xf32>
    %c0_82 = arith.constant 0 : index
    %c0_83 = arith.constant 0 : index
    %125 = vector.load %arg6[%c0_82, %c0_83] : memref<24x4xf32, #tpu.memory_space<vmem>>, vector<24x4xf32>
    tpu.vector_store %arg6[%c0_82, %c0_83], %124 {strides = array<i32>} : memref<24x4xf32, #tpu.memory_space<vmem>>, vector<24x4xf32>,
    %126 = vector.extract_strided_slice %122 {offsets = [8, 4], sizes = [8, 8], strides = [1, 1]} : vector<24x12xf32> to vector<8x8xf32>
    %127 = tpu.transpose %126, [1, 0] : vector<8x8xf32> -> vector<8x8xf32>
    %c3_84 = arith.constant 3 : index
    %c0_85 = arith.constant 0 : index
    %c0_86 = arith.constant 0 : index
    %c0_87 = arith.constant 0 : index
    %128 = vector.load %arg5[%c3_84, %c0_85, %c0_86, %c0_87] : memref<6x1x8x8xf32, #tpu.memory_space<vmem>>, vector<1x1x8x8xf32>
    %129 = vector.shape_cast %128 : vector<1x1x8x8xf32> to vector<8x8xf32>
    %130 = vector.shape_cast %127 : vector<8x8xf32> to vector<1x1x8x8xf32>
    tpu.vector_store %arg5[%c3_84, %c0_85, %c0_86, %c0_87], %130 {strides = array<i32>} : memref<6x1x8x8xf32, #tpu.memory_space<vmem>>, vector<1x1x8x8xf32>,
    %c0_88 = arith.constant 0 : index
    %c0_89 = arith.constant 0 : index
    %131 = vector.load %arg6[%c0_88, %c0_89] : memref<24x4xf32, #tpu.memory_space<vmem>>, vector<24x4xf32>
    %132 = vector.extract_strided_slice %131 {offsets = [2, 0], sizes = [22, 4], strides = [1, 1]} : vector<24x4xf32> to vector<22x4xf32>
    %133 = vector.extract_strided_slice %131 {offsets = [0, 0], sizes = [2, 4], strides = [1, 1]} : vector<24x4xf32> to vector<2x4xf32>
    %134 = tpu.concatenate %132, %133 in 0 : vector<22x4xf32>, vector<2x4xf32> -> vector<24x4xf32>
    %135 = tpu.concatenate %131, %134 in 1 : vector<24x4xf32>, vector<24x4xf32> -> vector<24x8xf32>
    %c4 = arith.constant 4 : index
    %c0_90 = arith.constant 0 : index
    %c0_91 = arith.constant 0 : index
    %136 = vector.load %arg2[%c4, %c0_90, %c0_91] : memref<6x8x4xf32, #tpu.memory_space<vmem>>, vector<1x8x4xf32>
    %137 = vector.shape_cast %136 : vector<1x8x4xf32> to vector<8x4xf32>
    %cst_92 = arith.constant dense<0.000000e+00> : vector<24x4xf32>
    %138 = tpu.matmul %135, %137, %cst_92 {dimension_numbers = #tpu.dot_dimension_numbers<[1], [0], [0], [1], [0, 0, 1, 1], [], []>} : vector<24x8xf32>, vector<8x4xf32>, vector<24x4xf32> -> vector<24x4xf32>
    %cst_93 = arith.constant 0.000000e+00 : f32
    %139 = vector.broadcast %cst_93 : f32 to vector<24x4xf32>
    %140 = arith.subf %139, %138 : vector<24x4xf32>
    %141 = math.exp %140 : vector<24x4xf32>
    %cst_94 = arith.constant 1.000000e+00 : f32
    %142 = vector.broadcast %cst_94 : f32 to vector<24x4xf32>
    %143 = arith.subf %142, %141 : vector<24x4xf32>
    %144 = arith.mulf %141, %141 : vector<24x4xf32>
    %cst_95 = arith.constant 1.000000e+00 : f32
    %145 = vector.broadcast %cst_95 : f32 to vector<24x4xf32>
    %146 = arith.addf %145, %144 : vector<24x4xf32>
    %147 = arith.divf %143, %146 : vector<24x4xf32>
    %c4_96 = arith.constant 4 : index
    %c0_97 = arith.constant 0 : index
    %c0_98 = arith.constant 0 : index
    %148 = vector.load %arg3[%c4_96, %c0_97, %c0_98] : memref<6x4x12xf32, #tpu.memory_space<vmem>>, vector<1x4x12xf32>
    %149 = vector.shape_cast %148 : vector<1x4x12xf32> to vector<4x12xf32>
    %cst_99 = arith.constant dense<0.000000e+00> : vector<24x12xf32>
    %150 = tpu.matmul %147, %149, %cst_99 {dimension_numbers = #tpu.dot_dimension_numbers<[1], [0], [0], [1], [0, 0, 1, 1], [], []>} : vector<24x4xf32>, vector<4x12xf32>, vector<24x12xf32> -> vector<24x12xf32>
    %c4_100 = arith.constant 4 : index
    %c0_101 = arith.constant 0 : index
    %c0_102 = arith.constant 0 : index
    %151 = vector.load %arg4[%c4_100, %c0_101, %c0_102] : memref<6x1x12xf32, #tpu.memory_space<vmem>>, vector<1x1x12xf32>
    %152 = vector.shape_cast %151 : vector<1x1x12xf32> to vector<1x12xf32>
    %153 = vector.broadcast %152 : vector<1x12xf32> to vector<24x12xf32>
    %154 = arith.addf %150, %153 : vector<24x12xf32>
    %155 = vector.extract_strided_slice %154 {offsets = [0, 0], sizes = [24, 4], strides = [1, 1]} : vector<24x12xf32> to vector<24x4xf32>
    %156 = arith.addf %155, %134 : vector<24x4xf32>
    %c0_103 = arith.constant 0 : index
    %c0_104 = arith.constant 0 : index
    %157 = vector.load %arg6[%c0_103, %c0_104] : memref<24x4xf32, #tpu.memory_space<vmem>>, vector<24x4xf32>
    tpu.vector_store %arg6[%c0_103, %c0_104], %156 {strides = array<i32>} : memref<24x4xf32, #tpu.memory_space<vmem>>, vector<24x4xf32>,
    %158 = vector.extract_strided_slice %154 {offsets = [6, 4], sizes = [8, 8], strides = [1, 1]} : vector<24x12xf32> to vector<8x8xf32>
    %159 = tpu.transpose %158, [1, 0] : vector<8x8xf32> -> vector<8x8xf32>
    %c4_105 = arith.constant 4 : index
    %c0_106 = arith.constant 0 : index
    %c0_107 = arith.constant 0 : index
    %c0_108 = arith.constant 0 : index
    %160 = vector.load %arg5[%c4_105, %c0_106, %c0_107, %c0_108] : memref<6x1x8x8xf32, #tpu.memory_space<vmem>>, vector<1x1x8x8xf32>
    %161 = vector.shape_cast %160 : vector<1x1x8x8xf32> to vector<8x8xf32>
    %162 = vector.shape_cast %159 : vector<8x8xf32> to vector<1x1x8x8xf32>
    tpu.vector_store %arg5[%c4_105, %c0_106, %c0_107, %c0_108], %162 {strides = array<i32>} : memref<6x1x8x8xf32, #tpu.memory_space<vmem>>, vector<1x1x8x8xf32>,
    %c0_109 = arith.constant 0 : index
    %c0_110 = arith.constant 0 : index
    %163 = vector.load %arg6[%c0_109, %c0_110] : memref<24x4xf32, #tpu.memory_space<vmem>>, vector<24x4xf32>
    %164 = vector.extract_strided_slice %163 {offsets = [4, 0], sizes = [20, 4], strides = [1, 1]} : vector<24x4xf32> to vector<20x4xf32>
    %165 = vector.extract_strided_slice %163 {offsets = [0, 0], sizes = [4, 4], strides = [1, 1]} : vector<24x4xf32> to vector<4x4xf32>
    %166 = tpu.concatenate %164, %165 in 0 : vector<20x4xf32>, vector<4x4xf32> -> vector<24x4xf32>
    %167 = tpu.concatenate %163, %166 in 1 : vector<24x4xf32>, vector<24x4xf32> -> vector<24x8xf32>
    %c5 = arith.constant 5 : index
    %c0_111 = arith.constant 0 : index
    %c0_112 = arith.constant 0 : index
    %168 = vector.load %arg2[%c5, %c0_111, %c0_112] : memref<6x8x4xf32, #tpu.memory_space<vmem>>, vector<1x8x4xf32>
    %169 = vector.shape_cast %168 : vector<1x8x4xf32> to vector<8x4xf32>
    %cst_113 = arith.constant dense<0.000000e+00> : vector<24x4xf32>
    %170 = tpu.matmul %167, %169, %cst_113 {dimension_numbers = #tpu.dot_dimension_numbers<[1], [0], [0], [1], [0, 0, 1, 1], [], []>} : vector<24x8xf32>, vector<8x4xf32>, vector<24x4xf32> -> vector<24x4xf32>
    %cst_114 = arith.constant 0.000000e+00 : f32
    %171 = vector.broadcast %cst_114 : f32 to vector<24x4xf32>
    %172 = arith.subf %171, %170 : vector<24x4xf32>
    %173 = math.exp %172 : vector<24x4xf32>
    %cst_115 = arith.constant 1.000000e+00 : f32
    %174 = vector.broadcast %cst_115 : f32 to vector<24x4xf32>
    %175 = arith.subf %174, %173 : vector<24x4xf32>
    %176 = arith.mulf %173, %173 : vector<24x4xf32>
    %cst_116 = arith.constant 1.000000e+00 : f32
    %177 = vector.broadcast %cst_116 : f32 to vector<24x4xf32>
    %178 = arith.addf %177, %176 : vector<24x4xf32>
    %179 = arith.divf %175, %178 : vector<24x4xf32>
    %c5_117 = arith.constant 5 : index
    %c0_118 = arith.constant 0 : index
    %c0_119 = arith.constant 0 : index
    %180 = vector.load %arg3[%c5_117, %c0_118, %c0_119] : memref<6x4x12xf32, #tpu.memory_space<vmem>>, vector<1x4x12xf32>
    %181 = vector.shape_cast %180 : vector<1x4x12xf32> to vector<4x12xf32>
    %cst_120 = arith.constant dense<0.000000e+00> : vector<24x12xf32>
    %182 = tpu.matmul %179, %181, %cst_120 {dimension_numbers = #tpu.dot_dimension_numbers<[1], [0], [0], [1], [0, 0, 1, 1], [], []>} : vector<24x4xf32>, vector<4x12xf32>, vector<24x12xf32> -> vector<24x12xf32>
    %c5_121 = arith.constant 5 : index
    %c0_122 = arith.constant 0 : index
    %c0_123 = arith.constant 0 : index
    %183 = vector.load %arg4[%c5_121, %c0_122, %c0_123] : memref<6x1x12xf32, #tpu.memory_space<vmem>>, vector<1x1x12xf32>
    %184 = vector.shape_cast %183 : vector<1x1x12xf32> to vector<1x12xf32>
    %185 = vector.broadcast %184 : vector<1x12xf32> to vector<24x12xf32>
    %186 = arith.addf %182, %185 : vector<24x12xf32>
    %187 = vector.extract_strided_slice %186 {offsets = [0, 0], sizes = [24, 4], strides = [1, 1]} : vector<24x12xf32> to vector<24x4xf32>
    %188 = arith.addf %187, %166 : vector<24x4xf32>
    %c0_124 = arith.constant 0 : index
    %c0_125 = arith.constant 0 : index
    %189 = vector.load %arg6[%c0_124, %c0_125] : memref<24x4xf32, #tpu.memory_space<vmem>>, vector<24x4xf32>
    tpu.vector_store %arg6[%c0_124, %c0_125], %188 {strides = array<i32>} : memref<24x4xf32, #tpu.memory_space<vmem>>, vector<24x4xf32>,
    %190 = vector.extract_strided_slice %186 {offsets = [2, 4], sizes = [8, 8], strides = [1, 1]} : vector<24x12xf32> to vector<8x8xf32>
    %191 = tpu.transpose %190, [1, 0] : vector<8x8xf32> -> vector<8x8xf32>
    %c5_126 = arith.constant 5 : index
    %c0_127 = arith.constant 0 : index
    %c0_128 = arith.constant 0 : index
    %c0_129 = arith.constant 0 : index
    %192 = vector.load %arg5[%c5_126, %c0_127, %c0_128, %c0_129] : memref<6x1x8x8xf32, #tpu.memory_space<vmem>>, vector<1x1x8x8xf32>
    %193 = vector.shape_cast %192 : vector<1x1x8x8xf32> to vector<8x8xf32>
    %194 = vector.shape_cast %191 : vector<8x8xf32> to vector<1x1x8x8xf32>
    tpu.vector_store %arg5[%c5_126, %c0_127, %c0_128, %c0_129], %194 {strides = array<i32>} : memref<6x1x8x8xf32, #tpu.memory_space<vmem>>, vector<1x1x8x8xf32>,
    return
  }
  func.func @transform_0(%arg0: i32) -> (i32, i32, i32) {
    %c0_i32 = arith.constant 0 : i32
    %c0_i32_0 = arith.constant 0 : i32
    %c0_i32_1 = arith.constant 0 : i32
    return %arg0, %c0_i32, %c0_i32_0 : i32, i32, i32
  }
  func.func @transform_1(%arg0: i32) -> (i32, i32, i32) {
    %c0_i32 = arith.constant 0 : i32
    %c0_i32_0 = arith.constant 0 : i32
    %c0_i32_1 = arith.constant 0 : i32
    %c0_i32_2 = arith.constant 0 : i32
    return %c0_i32, %c0_i32_0, %c0_i32_1 : i32, i32, i32
  }
  func.func @transform_2(%arg0: i32) -> (i32, i32, i32) {
    %c0_i32 = arith.constant 0 : i32
    %c0_i32_0 = arith.constant 0 : i32
    %c0_i32_1 = arith.constant 0 : i32
    %c0_i32_2 = arith.constant 0 : i32
    return %c0_i32, %c0_i32_0, %c0_i32_1 : i32, i32, i32
  }
  func.func @transform_3(%arg0: i32) -> (i32, i32, i32) {
    %c0_i32 = arith.constant 0 : i32
    %c0_i32_0 = arith.constant 0 : i32
    %c0_i32_1 = arith.constant 0 : i32
    %c0_i32_2 = arith.constant 0 : i32
    return %c0_i32, %c0_i32_0, %c0_i32_1 : i32, i32, i32
  }
  func.func @transform_4(%arg0: i32) -> (i32, i32, i32, i32) {
    %c0_i32 = arith.constant 0 : i32
    %c0_i32_0 = arith.constant 0 : i32
    %c0_i32_1 = arith.constant 0 : i32
    %c0_i32_2 = arith.constant 0 : i32
    return %c0_i32, %arg0, %c0_i32_0, %c0_i32_1 : i32, i32, i32, i32
  }
}

</mosaic_0001>

<llo_original>
// kernel: tpu_custom_call.1
$region0: #{tpu_custom_call.1}
  #allocation0 [shape = 'u32[]', space=smem, size = 0x4, offset = 0x4, fixed_abs, tag = 'smem constant byte address 0x4 - core index']
  #allocation1 [shape = 'u32[144,128]{1,0:T(1,128)}', space=vmem, size = 0x12000, scoped, tag = 'internal scratch']
  #allocation2 [shape = 'f32[24,4]{1,0:T(8,128)}', space=vmem, size = 0x3000, scoped, tag = 'scratch operand']
  %s0 = inlined_call_operand.vmem [shape: f32[2,24,4], index: 0, kind: input, shape index: {}]
  %s1 = inlined_call_operand.vmem [shape: f32[6,8,4], index: 1, kind: input, shape index: {}]
  %s2 = inlined_call_operand.vmem [shape: f32[6,4,12], index: 2, kind: input, shape index: {}]
  %s3 = inlined_call_operand.vmem [shape: f32[6,1,12], index: 3, kind: input, shape index: {}]
  %s4 = inlined_call_operand.hbm [shape: f32[6,2,8,8], index: 4, kind: output, shape index: {}]
  %s5 = sld [smem:[#allocation0]]
  $region49: #{tpu_custom_call.1} parent=0
    _
  %s7 = ssub.s32 1, %s5
  %s8 = scalar_select 0, %s7, %s5
  $region1: #{tpu_custom_call.1} parent=0
    #allocation3 [shape = 'u8[49152]{0}', space=vmem, size = 0xc000, scoped, tag = 'output window, operand 0']
    #allocation4 [shape = 's32[2]{0}', space=sflag, size = 0x8, scoped, tag = 'scoped memory for tpu_custom_call.1']
    %9 = vsyncpa [#allocation4], 0
    %s10 = scalar_lea.sflag [#allocation4], 1
    %11 = vsyncpa %s10, 0
    loop: start=0, step=1, limit=4
    $region2: #{tpu_custom_call.1} parent=1 // loop_pre_header
      _
    $region3: #{tpu_custom_call.1} parent=1 // loop_header
      %s13 = sphi 0, %s17
      %p14 = scmp.ge.s32.totalorder %s13, 4
      %s23 = sphi 0, %s25
      %s26 = sphi 0, %s23
      %s27 = sphi 0, %s26
      %s43 = sphi 0, %s27
      %s47 = sphi 0, %s47
      %s49 = sphi 0, %s47
      %s50 = sphi 0, %s49
      %s64 = sphi 0, %s50
      %s68 = sphi 0, %s68
      %s70 = sphi 0, %s68
      %s71 = sphi 0, %s70
      %s85 = sphi 0, %s71
      %s89 = sphi 0, %s89
      %s91 = sphi 0, %s89
      %s92 = sphi 0, %s91
      %s106 = sphi 0, %s92
      %s112 = sphi 0, %s114
      %s115 = sphi 0, %s112
      %s116 = sphi 0, %s115
      %s132 = sphi 0, %s116
    $region4: #{tpu_custom_call.1} parent=1 // loop_header_branch
      %16 = sbr.rel (%p14) target = $region8
    $region5: #{tpu_custom_call.1} parent=1 // loop_body
      %s18 = ssub.s32 %s13, 1
      %s19 = ssub.s32 %s13, 2
      %s20 = sadd.s32 %s13, 1
      %s21 = ssub.s32 %s13, %s20
      %p22 = scmp.eq.s32.totalorder %s21, 0
      %s24 = sadd.s32 %s23, 1
      %s25 = scalar_select %p22, %s23, %s24
      %p28 = pneg %p22
      %p29 = scmp.eq.s32.totalorder %s13, 1
      %p30 = por %p28, %p29
      %p31 = scmp.ne.s32.totalorder %s23, %s26
      %p32 = scmp.eq.s32.totalorder %s13, 0
      %p33 = por %p31, %p32
      %p34 = scmp.ne.s32.totalorder %s23, %s26
      %p35 = scmp.eq.s32.totalorder %s18, 1
      %p36 = por %p34, %p35
      %p37 = scmp.ne.s32.totalorder %s26, %s27
      %p38 = scmp.eq.s32.totalorder %s18, 0
      %p39 = por %p37, %p38
      %p40 = scmp.ne.s32.totalorder %s26, %s27
      %p41 = scmp.eq.s32.totalorder %s19, 1
      %p42 = por %p40, %p41
      %p44 = scmp.ne.s32.totalorder %s27, %s43
      %p45 = scmp.eq.s32.totalorder %s19, 0
      %p46 = por %p44, %p45
      %s48 = sadd.s32 %s47, 1
      %p51 = scmp.eq.s32.totalorder %s13, 1
      %p52 = scmp.ne.s32.totalorder %s47, %s49
      %p53 = scmp.eq.s32.totalorder %s13, 0
      %p54 = por %p52, %p53
      %p55 = scmp.ne.s32.totalorder %s47, %s49
      %p56 = scmp.eq.s32.totalorder %s18, 1
      %p57 = por %p55, %p56
      %p58 = scmp.ne.s32.totalorder %s49, %s50
      %p59 = scmp.eq.s32.totalorder %s18, 0
      %p60 = por %p58, %p59
      %p61 = scmp.ne.s32.totalorder %s49, %s50
      %p62 = scmp.eq.s32.totalorder %s19, 1
      %p63 = por %p61, %p62
      %p65 = scmp.ne.s32.totalorder %s50, %s64
      %p66 = scmp.eq.s32.totalorder %s19, 0
      %p67 = por %p65, %p66
      %s69 = sadd.s32 %s68, 1
      %p72 = scmp.eq.s32.totalorder %s13, 1
      %p73 = scmp.ne.s32.totalorder %s68, %s70
      %p74 = scmp.eq.s32.totalorder %s13, 0
      %p75 = por %p73, %p74
      %p76 = scmp.ne.s32.totalorder %s68, %s70
      %p77 = scmp.eq.s32.totalorder %s18, 1
      %p78 = por %p76, %p77
      %p79 = scmp.ne.s32.totalorder %s70, %s71
      %p80 = scmp.eq.s32.totalorder %s18, 0
      %p81 = por %p79, %p80
      %p82 = scmp.ne.s32.totalorder %s70, %s71
      %p83 = scmp.eq.s32.totalorder %s19, 1
      %p84 = por %p82, %p83
      %p86 = scmp.ne.s32.totalorder %s71, %s85
      %p87 = scmp.eq.s32.totalorder %s19, 0
      %p88 = por %p86, %p87
      %s90 = sadd.s32 %s89, 1
      %p93 = scmp.eq.s32.totalorder %s13, 1
      %p94 = scmp.ne.s32.totalorder %s89, %s91
      %p95 = scmp.eq.s32.totalorder %s13, 0
      %p96 = por %p94, %p95
      %p97 = scmp.ne.s32.totalorder %s89, %s91
      %p98 = scmp.eq.s32.totalorder %s18, 1
      %p99 = por %p97, %p98
      %p100 = scmp.ne.s32.totalorder %s91, %s92
      %p101 = scmp.eq.s32.totalorder %s18, 0
      %p102 = por %p100, %p101
      %p103 = scmp.ne.s32.totalorder %s91, %s92
      %p104 = scmp.eq.s32.totalorder %s19, 1
      %p105 = por %p103, %p104
      %p107 = scmp.ne.s32.totalorder %s92, %s106
      %p108 = scmp.eq.s32.totalorder %s19, 0
      %p109 = por %p107, %p108
      %s110 = ssub.s32 %s13, %s20
      %p111 = scmp.eq.s32.totalorder %s110, 0
      %s113 = sadd.s32 %s112, 1
      %s114 = scalar_select %p111, %s112, %s113
      %p117 = pneg %p111
      %p118 = scmp.eq.s32.totalorder %s13, 1
      %p119 = por %p117, %p118
      %p120 = scmp.ne.s32.totalorder %s112, %s115
      %p121 = scmp.eq.s32.totalorder %s13, 0
      %p122 = por %p120, %p121
      %p123 = scmp.ne.s32.totalorder %s112, %s115
      %p124 = scmp.eq.s32.totalorder %s18, 1
      %p125 = por %p123, %p124
      %p126 = scmp.ne.s32.totalorder %s115, %s116
      %p127 = scmp.eq.s32.totalorder %s18, 0
      %p128 = por %p126, %p127
      %p129 = scmp.ne.s32.totalorder %s115, %s116
      %p130 = scmp.eq.s32.totalorder %s19, 1
      %p131 = por %p129, %p130
      %p133 = scmp.ne.s32.totalorder %s116, %s132
      %p134 = scmp.eq.s32.totalorder %s19, 0
      %p135 = por %p133, %p134
      %p136 = scmp.le.s32.totalorder 1, %s13
      %p137 = scmp.lt.s32.totalorder %s13, 3
      %p138 = pnand %p136, %p137
      %p139 = pneg %p138
      // Predicated region
      $region9: #{tpu_custom_call.1} parent=5 // pred_check
        _
      $region10: #{tpu_custom_call.1} parent=5 // pred_check_branch
        %141 = sbr.rel (%p138) target = $region12
      $region11: #{tpu_custom_call.1} parent=5 // pred_region
        %s142 = ssub.s32 %s13, 1
        // Predicated region
        $region13: #{tpu_custom_call.1} parent=11 // pred_check
          %p143 = pneg %p60
        $region14: #{tpu_custom_call.1} parent=11 // pred_check_branch
          %145 = sbr.rel (%p143) target = $region16
        $region15: #{tpu_custom_call.1} parent=11 // pred_region
          _
        $region16: #{tpu_custom_call.1} parent=11 // pred_fallthru
          _
        // Predicated region
        $region17: #{tpu_custom_call.1} parent=11 // pred_check
          %p146 = pneg %p81
        $region18: #{tpu_custom_call.1} parent=11 // pred_check_branch
          %148 = sbr.rel (%p146) target = $region20
        $region19: #{tpu_custom_call.1} parent=11 // pred_region
          _
        $region20: #{tpu_custom_call.1} parent=11 // pred_fallthru
          _
        // Predicated region
        $region21: #{tpu_custom_call.1} parent=11 // pred_check
          %p149 = pneg %p102
        $region22: #{tpu_custom_call.1} parent=11 // pred_check_branch
          %151 = sbr.rel (%p149) target = $region24
        $region23: #{tpu_custom_call.1} parent=11 // pred_region
          _
        $region24: #{tpu_custom_call.1} parent=11 // pred_fallthru
          _
      $region12: #{tpu_custom_call.1} parent=5 // pred_fallthru
        _
      %p152 = scmp.lt.s32.totalorder %s13, 2
      // Predicated region
      $region25: #{tpu_custom_call.1} parent=5 // pred_check
        %p153 = pneg %p152
      $region26: #{tpu_custom_call.1} parent=5 // pred_check_branch
        %155 = sbr.rel (%p153) target = $region28
      $region27: #{tpu_custom_call.1} parent=5 // pred_region
        // Predicated region
        $region29: #{tpu_custom_call.1} parent=27 // pred_check
          %p156 = pneg %p33
        $region30: #{tpu_custom_call.1} parent=27 // pred_check_branch
          %158 = sbr.rel (%p156) target = $region32
        $region31: #{tpu_custom_call.1} parent=27 // pred_region
          %p159 = scmp.lt.s32.totalorder %s13, 1
          %s160 = scalar_select %p159, %s13, 1
          %s161 = smul.addr %s160, 3
          %s162 = smul.addr %s161, 8
          %s163 = scalar_lea.vmem %s0, %s162
        $region32: #{tpu_custom_call.1} parent=27 // pred_fallthru
          _
      $region28: #{tpu_custom_call.1} parent=5 // pred_fallthru
        _
      %p164 = scmp.le.s32.totalorder 1, %s13
      %p165 = scmp.lt.s32.totalorder %s13, 3
      %p166 = pnand %p164, %p165
      %p167 = pneg %p166
      // Predicated region
      $region33: #{tpu_custom_call.1} parent=5 // pred_check
        _
      $region34: #{tpu_custom_call.1} parent=5 // pred_check_branch
        %169 = sbr.rel (%p166) target = $region36
      $region35: #{tpu_custom_call.1} parent=5 // pred_region
        %s170 = ssub.s32 %s13, 1
        %p171 = scmp.lt.s32.totalorder %s18, 1
        %s172 = scalar_select %p171, %s18, 1
        %s173 = smul.addr %s172, 3
        %s174 = smul.addr %s173, 8
        %s175 = scalar_lea.vmem %s0, %s174
        %p176 = pneg %p39
        %p177 = pneg %p36
        %p178 = pneg %p60
        %p179 = pneg %p57
        %p180 = pneg %p81
        %p181 = pneg %p78
        %p182 = pneg %p102
        %p183 = pneg %p99
        %p184 = pneg %p128
        %p185 = pneg %p125
        %s186 = sand.u32 %s115, 1
        %s187 = scalar_lea.sflag [#allocation4], %s186
        %s188 = sand.u32 %s115, 1
        %s189 = smul.addr %s188, 48
        %s190 = scalar_lea.vmem [#allocation3], %s189
        %p191 = scmp.lt.s32.totalorder %s18, 1
        %s192 = scalar_select %p191, %s18, 1
        %s193 = smul.addr %s192, 3
        %s194 = smul.addr %s193, 8
        %s195 = scalar_lea.vmem %s0, %s194
        %v196 = vld [vmem:[%s195] sm:$0xff]
        %v197 = vld [vmem:[%s195 + $0x8] sm:$0xff]
        %v198 = vld [vmem:[%s195 + $0x10] sm:$0xff]
        %vm199 = vcmask 31744
        %200 = vst.msk [vmem:[#allocation2] sm:$0xff] %vm199, %v196
        %201 = vst.msk [vmem:[#allocation2 + $0x8] sm:$0xff] %vm199, %v197
        %202 = vst.msk [vmem:[#allocation2 + $0x10] sm:$0xff] %vm199, %v198
        %v203 = vld [vmem:[#allocation2] sm:$0xff]
        %v204 = vld [vmem:[#allocation2 + $0x8] sm:$0xff]
        %v205 = vld [vmem:[#allocation2 + $0x10] sm:$0xff]
        %vm209 = vcmask 1046528
        %v210 = vrot.slane %v203, 1
        %v211 = vrot.slane %v204, 1
        %v212 = vsel %vm209, %v210, %v211
        %v213 = vrot.slane %v205, 1
        %v214 = vsel %vm209, %v211, %v213
        %v219 = vsel %vm209, %v213, %v210
        %221 = vrot.lane.b32.xlu0 %v212, 4
        %v222 = vpop.permute.xlu0 %221
        %223 = vrot.lane.b32.xlu0 %v214, 4
        %v224 = vpop.permute.xlu0 %223
        %225 = vrot.lane.b32.xlu0 %v219, 4
        %v226 = vpop.permute.xlu0 %225
        %v230 = vsel %vm199, %v203, %v222
        %v231 = vsel %vm199, %v204, %v224
        %v232 = vsel %vm199, %v205, %v226
        %v233 = vld [vmem:[%s1] sm:$0xff]
        %vm234 = vcmask 64512
        %v236 = vsel %vm234, %v230, 0
        %v239 = vsel %vm234, %v231, 0
        %v242 = vsel %vm234, %v232, 0
        %244 = vmatprep.subr.mxu0 0.0
        %245 = vmatpush1.msra.mxu0 %v233
        %246 = vmatprep.subr.mxu0 0.0
        %247 = vmatpush1.msra.mxu0 0.0
        %248 = vmatprep.subr.mxu0 0.0
        %249 = vmatpush1.msra.mxu0 0.0
        %250 = vmatprep.subr.mxu0 0.0
        %251 = vmatpush1.msra.mxu0 0.0
        %252 = vmatprep.subr.mxu0 0.0
        %253 = vmatpush1.msra.mxu0 0.0
        %254 = vmatprep.subr.mxu0 0.0
        %255 = vmatpush1.msra.mxu0 0.0
        %256 = vmatprep.subr.mxu0 0.0
        %257 = vmatpush1.msra.mxu0 0.0
        %258 = vmatprep.subr.mxu0 0.0
        %259 = vmatpush1.msra.mxu0 0.0
        %260 = vmatprep.subr.mxu0 0.0
        %261 = vmatpush1.msra.mxu0 0.0
        %262 = vmatprep.subr.mxu0 0.0
        %263 = vmatpush1.msra.mxu0 0.0
        %264 = vmatprep.subr.mxu0 0.0
        %265 = vmatpush1.msra.mxu0 0.0
        %266 = vmatprep.subr.mxu0 0.0
        %267 = vmatpush1.msra.mxu0 0.0
        %268 = vmatprep.subr.mxu0 0.0
        %269 = vmatpush1.msra.mxu0 0.0
        %270 = vmatprep.subr.mxu0 0.0
        %271 = vmatpush1.msra.mxu0 0.0
        %272 = vmatprep.subr.mxu0 0.0
        %273 = vmatpush1.msra.mxu0 0.0
        %274 = vmatprep.subr.mxu0 0.0
        %275 = vmatpush1.msra.mxu0 0.0
        %276 = vmatprep.subr.mxu0 0.0
        %277 = vmatpush1.msra.mxu0 0.0
        %278 = vmatprep.subr.mxu0 0.0
        %279 = vmatpush1.msra.mxu0 0.0
        %280 = vmatprep.subr.mxu0 0.0
        %281 = vmatpush1.msra.mxu0 0.0
        %282 = vmatprep.subr.mxu0 0.0
        %283 = vmatpush1.msra.mxu0 0.0
        %284 = vmatprep.subr.mxu0 0.0
        %285 = vmatpush1.msra.mxu0 0.0
        %286 = vmatprep.subr.mxu0 0.0
        %287 = vmatpush1.msra.mxu0 0.0
        %288 = vmatprep.subr.mxu0 0.0
        %289 = vmatpush1.msra.mxu0 0.0
        %290 = vmatprep.subr.mxu0 0.0
        %291 = vmatpush1.msra.mxu0 0.0
        %292 = vmatprep.subr.mxu0 0.0
        %293 = vmatpush1.msra.mxu0 0.0
        %294 = vmatprep.subr.mxu0 0.0
        %295 = vmatpush1.msra.mxu0 0.0
        %296 = vmatprep.subr.mxu0 0.0
        %297 = vmatpush1.msra.mxu0 0.0
        %298 = vmatprep.subr.mxu0 0.0
        %299 = vmatpush1.msra.mxu0 0.0
        %300 = vmatprep.subr.mxu0 0.0
        %301 = vmatpush1.msra.mxu0 0.0
        %302 = vmatprep.subr.mxu0 0.0
        %303 = vmatpush1.msra.mxu0 0.0
        %304 = vmatprep.subr.mxu0 0.0
        %305 = vmatpush1.msra.mxu0 0.0
        %306 = vmatprep.subr.mxu0 0.0
        %307 = vmatpush1.msra.mxu0 0.0
        %308 = vmatprep.mubr.f32.mxu0 0.0
        %309 = vmatmul.mubr.f32.gmra.mrb[0].mxu0 %v236
        %v310 = vpop.f32.mrb[0].mxu0
        %v311 = vadd.f32 0.0, %v310
        %v312 = vpop.f32.mrb[0].mxu0
        %313 = vmatprep.mubr.f32.mxu0 0.0
        %314 = vmatmul.mubr.f32.gmra.mrb[0].mxu0 %v239
        %v315 = vpop.f32.mrb[0].mxu0
        %v316 = vadd.f32 0.0, %v315
        %v317 = vpop.f32.mrb[0].mxu0
        %318 = vmatprep.mubr.f32.mxu0 0.0
        %319 = vmatmul.mubr.f32.gmra.mrb[0].mxu0 %v242
        %v320 = vpop.f32.mrb[0].mxu0
        %v321 = vadd.f32 0.0, %v320
        %v322 = vpop.f32.mrb[0].mxu0
        %323 = vdwg.mxu0
        %v324 = vsub.f32 0.0, %v311
        %v325 = vsub.f32 0.0, %v316
        %v326 = vsub.f32 0.0, %v321
        %v327 = vmul.f32 %v324, 1.442695
        %v328 = vpow.pop %v327
        %v329 = vmul.f32 %v325, 1.442695
        %v330 = vpow.pop %v329
        %v331 = vmul.f32 %v326, 1.442695
        %v332 = vpow.pop %v331
        %v333 = vsub.f32 1.0, %v328
        %v334 = vsub.f32 1.0, %v330
        %v335 = vsub.f32 1.0, %v332
        %v336 = vmul.f32 %v328, %v328
        %v337 = vmul.f32 %v330, %v330
        %v338 = vmul.f32 %v332, %v332
        %v339 = vadd.f32 %v336, 1.0
        %v340 = vadd.f32 %v337, 1.0
        %v341 = vadd.f32 %v338, 1.0
        %v342 = vrcp.pop %v339
        %v343 = vmul.f32 %v333, %v342
        %v344 = vrcp.pop %v340
        %v345 = vmul.f32 %v334, %v344
        %v346 = vrcp.pop %v341
        %v347 = vmul.f32 %v335, %v346
        %v348 = vld [vmem:[%s2] sm:$0xf]
        %v349 = vld [vmem:[%s3] sm:$0x1]
        %v351 = vlaneseq
        %v352 = vshrl.u32 %v351, 7
        %v353 = vsub.s32 0, %v352
        %v354 = vrot.slane %v349, %v353
        %v357 = vsel %vm199, %v343, 0
        %v360 = vsel %vm199, %v345, 0
        %v363 = vsel %vm199, %v347, 0
        %vm365 = vcmask 1043456
        %v367 = vsel %vm365, %v348, 0
        %369 = vmatprep.subr.mxu0 0.0
        %370 = vmatpush1.msra.mxu0 %v367
        %371 = vmatprep.subr.mxu0 0.0
        %372 = vmatpush1.msra.mxu0 0.0
        %373 = vmatprep.subr.mxu0 0.0
        %374 = vmatpush1.msra.mxu0 0.0
        %375 = vmatprep.subr.mxu0 0.0
        %376 = vmatpush1.msra.mxu0 0.0
        %377 = vmatprep.subr.mxu0 0.0
        %378 = vmatpush1.msra.mxu0 0.0
        %379 = vmatprep.subr.mxu0 0.0
        %380 = vmatpush1.msra.mxu0 0.0
        %381 = vmatprep.subr.mxu0 0.0
        %382 = vmatpush1.msra.mxu0 0.0
        %383 = vmatprep.subr.mxu0 0.0
        %384 = vmatpush1.msra.mxu0 0.0
        %385 = vmatprep.subr.mxu0 0.0
        %386 = vmatpush1.msra.mxu0 0.0
        %387 = vmatprep.subr.mxu0 0.0
        %388 = vmatpush1.msra.mxu0 0.0
        %389 = vmatprep.subr.mxu0 0.0
        %390 = vmatpush1.msra.mxu0 0.0
        %391 = vmatprep.subr.mxu0 0.0
        %392 = vmatpush1.msra.mxu0 0.0
        %393 = vmatprep.subr.mxu0 0.0
        %394 = vmatpush1.msra.mxu0 0.0
        %395 = vmatprep.subr.mxu0 0.0
        %396 = vmatpush1.msra.mxu0 0.0
        %397 = vmatprep.subr.mxu0 0.0
        %398 = vmatpush1.msra.mxu0 0.0
        %399 = vmatprep.subr.mxu0 0.0
        %400 = vmatpush1.msra.mxu0 0.0
        %401 = vmatprep.subr.mxu0 0.0
        %402 = vmatpush1.msra.mxu0 0.0
        %403 = vmatprep.subr.mxu0 0.0
        %404 = vmatpush1.msra.mxu0 0.0
        %405 = vmatprep.subr.mxu0 0.0
        %406 = vmatpush1.msra.mxu0 0.0
        %407 = vmatprep.subr.mxu0 0.0
        %408 = vmatpush1.msra.mxu0 0.0
        %409 = vmatprep.subr.mxu0 0.0
        %410 = vmatpush1.msra.mxu0 0.0
        %411 = vmatprep.subr.mxu0 0.0
        %412 = vmatpush1.msra.mxu0 0.0
        %413 = vmatprep.subr.mxu0 0.0
        %414 = vmatpush1.msra.mxu0 0.0
        %415 = vmatprep.subr.mxu0 0.0
        %416 = vmatpush1.msra.mxu0 0.0
        %417 = vmatprep.subr.mxu0 0.0
        %418 = vmatpush1.msra.mxu0 0.0
        %419 = vmatprep.subr.mxu0 0.0
        %420 = vmatpush1.msra.mxu0 0.0
        %421 = vmatprep.subr.mxu0 0.0
        %422 = vmatpush1.msra.mxu0 0.0
        %423 = vmatprep.subr.mxu0 0.0
        %424 = vmatpush1.msra.mxu0 0.0
        %425 = vmatprep.subr.mxu0 0.0
        %426 = vmatpush1.msra.mxu0 0.0
        %427 = vmatprep.subr.mxu0 0.0
        %428 = vmatpush1.msra.mxu0 0.0
        %429 = vmatprep.subr.mxu0 0.0
        %430 = vmatpush1.msra.mxu0 0.0
        %431 = vmatprep.subr.mxu0 0.0
        %432 = vmatpush1.msra.mxu0 0.0
        %433 = vmatprep.mubr.f32.mxu0 0.0
        %434 = vmatmul.mubr.f32.gmra.mrb[0].mxu0 %v357
        %v435 = vpop.f32.mrb[0].mxu0
        %v436 = vadd.f32 %v354, %v435
        %v437 = vpop.f32.mrb[0].mxu0
        %438 = vmatprep.mubr.f32.mxu0 0.0
        %439 = vmatmul.mubr.f32.gmra.mrb[0].mxu0 %v360
        %v440 = vpop.f32.mrb[0].mxu0
        %v441 = vadd.f32 %v354, %v440
        %v442 = vpop.f32.mrb[0].mxu0
        %443 = vmatprep.mubr.f32.mxu0 0.0
        %444 = vmatmul.mubr.f32.gmra.mrb[0].mxu0 %v363
        %v445 = vpop.f32.mrb[0].mxu0
        %v446 = vadd.f32 %v354, %v445
        %v447 = vpop.f32.mrb[0].mxu0
        %448 = vdwg.mxu0
        %v449 = vadd.f32 %v436, %v212
        %v450 = vadd.f32 %v441, %v214
        %v451 = vadd.f32 %v446, %v219
        %452 = vst.msk [vmem:[#allocation2] sm:$0xff] %vm199, %v449
        %453 = vst.msk [vmem:[#allocation2 + $0x8] sm:$0xff] %vm199, %v450
        %454 = vst.msk [vmem:[#allocation2 + $0x10] sm:$0xff] %vm199, %v451
        %vm457 = vcmask 1040384
        %v458 = vrot.slane %v441, 7
        %v459 = vrot.slane %v446, 7
        %v460 = vsel %vm457, %v458, %v459
        %461 = vrot.lane.b32.xlu0 %v460, 124
        %v462 = vpop.permute.xlu0 %461
        %464 = vxpose.xlu0.b32.start [1/16] %v462, 128
        %465 = vxpose.xlu0.b32.cont [2/16] 0.0, 128
        %466 = vxpose.xlu0.b32.cont [3/16] 0.0, 128
        %467 = vxpose.xlu0.b32.cont [4/16] 0.0, 128
        %468 = vxpose.xlu0.b32.cont [5/16] 0.0, 128
        %469 = vxpose.xlu0.b32.cont [6/16] 0.0, 128
        %470 = vxpose.xlu0.b32.cont [7/16] 0.0, 128
        %471 = vxpose.xlu0.b32.cont [8/16] 0.0, 128
        %472 = vxpose.xlu0.b32.cont [9/16] 0.0, 128
        %473 = vxpose.xlu0.b32.cont [10/16] 0.0, 128
        %474 = vxpose.xlu0.b32.cont [11/16] 0.0, 128
        %475 = vxpose.xlu0.b32.cont [12/16] 0.0, 128
        %476 = vxpose.xlu0.b32.cont [13/16] 0.0, 128
        %477 = vxpose.xlu0.b32.cont [14/16] 0.0, 128
        %478 = vxpose.xlu0.b32.cont [15/16] 0.0, 128
        %479 = vxpose.xlu0.b32.end [16/16] 0.0, 128
        %v480 = vpop.trf.xlu0
        %v481 = vpop.trf.xlu0
        %v482 = vpop.trf.xlu0
        %v483 = vpop.trf.xlu0
        %v484 = vpop.trf.xlu0
        %v485 = vpop.trf.xlu0
        %v486 = vpop.trf.xlu0
        %v487 = vpop.trf.xlu0
        %v488 = vpop.trf.xlu0
        %v489 = vpop.trf.xlu0
        %v490 = vpop.trf.xlu0
        %v491 = vpop.trf.xlu0
        %v492 = vpop.trf.xlu0
        %v493 = vpop.trf.xlu0
        %v494 = vpop.trf.xlu0
        %v495 = vpop.trf.xlu0
        %496 = vst.msk [vmem:[%s190] sm:$0xff] %vm234, %v480
        %v497 = vld [vmem:[#allocation2] sm:$0xff]
        %v498 = vld [vmem:[#allocation2 + $0x8] sm:$0xff]
        %v499 = vld [vmem:[#allocation2 + $0x10] sm:$0xff]
        %vm503 = vcmask 1045504
        %v504 = vrot.slane %v497, 2
        %v505 = vrot.slane %v498, 2
        %v506 = vsel %vm503, %v504, %v505
        %v507 = vrot.slane %v499, 2
        %v508 = vsel %vm503, %v505, %v507
        %v513 = vsel %vm503, %v507, %v504
        %515 = vrot.lane.b32.xlu0 %v506, 4
        %v516 = vpop.permute.xlu0 %515
        %517 = vrot.lane.b32.xlu0 %v508, 4
        %v518 = vpop.permute.xlu0 %517
        %519 = vrot.lane.b32.xlu0 %v513, 4
        %v520 = vpop.permute.xlu0 %519
        %v524 = vsel %vm199, %v497, %v516
        %v525 = vsel %vm199, %v498, %v518
        %v526 = vsel %vm199, %v499, %v520
        %s527 = scalar_lea.vmem %s1, 8
        %v528 = vld [vmem:[%s527] sm:$0xff]
        %v530 = vsel %vm234, %v524, 0
        %v533 = vsel %vm234, %v525, 0
        %v536 = vsel %vm234, %v526, 0
        %538 = vmatprep.subr.mxu0 0.0
        %539 = vmatpush1.msra.mxu0 %v528
        %540 = vmatprep.subr.mxu0 0.0
        %541 = vmatpush1.msra.mxu0 0.0
        %542 = vmatprep.subr.mxu0 0.0
        %543 = vmatpush1.msra.mxu0 0.0
        %544 = vmatprep.subr.mxu0 0.0
        %545 = vmatpush1.msra.mxu0 0.0
        %546 = vmatprep.subr.mxu0 0.0
        %547 = vmatpush1.msra.mxu0 0.0
        %548 = vmatprep.subr.mxu0 0.0
        %549 = vmatpush1.msra.mxu0 0.0
        %550 = vmatprep.subr.mxu0 0.0
        %551 = vmatpush1.msra.mxu0 0.0
        %552 = vmatprep.subr.mxu0 0.0
        %553 = vmatpush1.msra.mxu0 0.0
        %554 = vmatprep.subr.mxu0 0.0
        %555 = vmatpush1.msra.mxu0 0.0
        %556 = vmatprep.subr.mxu0 0.0
        %557 = vmatpush1.msra.mxu0 0.0
        %558 = vmatprep.subr.mxu0 0.0
        %559 = vmatpush1.msra.mxu0 0.0
        %560 = vmatprep.subr.mxu0 0.0
        %561 = vmatpush1.msra.mxu0 0.0
        %562 = vmatprep.subr.mxu0 0.0
        %563 = vmatpush1.msra.mxu0 0.0
        %564 = vmatprep.subr.mxu0 0.0
        %565 = vmatpush1.msra.mxu0 0.0
        %566 = vmatprep.subr.mxu0 0.0
        %567 = vmatpush1.msra.mxu0 0.0
        %568 = vmatprep.subr.mxu0 0.0
        %569 = vmatpush1.msra.mxu0 0.0
        %570 = vmatprep.subr.mxu0 0.0
        %571 = vmatpush1.msra.mxu0 0.0
        %572 = vmatprep.subr.mxu0 0.0
        %573 = vmatpush1.msra.mxu0 0.0
        %574 = vmatprep.subr.mxu0 0.0
        %575 = vmatpush1.msra.mxu0 0.0
        %576 = vmatprep.subr.mxu0 0.0
        %577 = vmatpush1.msra.mxu0 0.0
        %578 = vmatprep.subr.mxu0 0.0
        %579 = vmatpush1.msra.mxu0 0.0
        %580 = vmatprep.subr.mxu0 0.0
        %581 = vmatpush1.msra.mxu0 0.0
        %582 = vmatprep.subr.mxu0 0.0
        %583 = vmatpush1.msra.mxu0 0.0
        %584 = vmatprep.subr.mxu0 0.0
        %585 = vmatpush1.msra.mxu0 0.0
        %586 = vmatprep.subr.mxu0 0.0
        %587 = vmatpush1.msra.mxu0 0.0
        %588 = vmatprep.subr.mxu0 0.0
        %589 = vmatpush1.msra.mxu0 0.0
        %590 = vmatprep.subr.mxu0 0.0
        %591 = vmatpush1.msra.mxu0 0.0
        %592 = vmatprep.subr.mxu0 0.0
        %593 = vmatpush1.msra.mxu0 0.0
        %594 = vmatprep.subr.mxu0 0.0
        %595 = vmatpush1.msra.mxu0 0.0
        %596 = vmatprep.subr.mxu0 0.0
        %597 = vmatpush1.msra.mxu0 0.0
        %598 = vmatprep.subr.mxu0 0.0
        %599 = vmatpush1.msra.mxu0 0.0
        %600 = vmatprep.subr.mxu0 0.0
        %601 = vmatpush1.msra.mxu0 0.0
        %602 = vmatprep.mubr.f32.mxu0 0.0
        %603 = vmatmul.mubr.f32.gmra.mrb[0].mxu0 %v530
        %v604 = vpop.f32.mrb[0].mxu0
        %v605 = vadd.f32 0.0, %v604
        %v606 = vpop.f32.mrb[0].mxu0
        %607 = vmatprep.mubr.f32.mxu0 0.0
        %608 = vmatmul.mubr.f32.gmra.mrb[0].mxu0 %v533
        %v609 = vpop.f32.mrb[0].mxu0
        %v610 = vadd.f32 0.0, %v609
        %v611 = vpop.f32.mrb[0].mxu0
        %612 = vmatprep.mubr.f32.mxu0 0.0
        %613 = vmatmul.mubr.f32.gmra.mrb[0].mxu0 %v536
        %v614 = vpop.f32.mrb[0].mxu0
        %v615 = vadd.f32 0.0, %v614
        %v616 = vpop.f32.mrb[0].mxu0
        %617 = vdwg.mxu0
        %v618 = vsub.f32 0.0, %v605
        %v619 = vsub.f32 0.0, %v610
        %v620 = vsub.f32 0.0, %v615
        %v621 = vmul.f32 %v618, 1.442695
        %v622 = vpow.pop %v621
        %v623 = vmul.f32 %v619, 1.442695
        %v624 = vpow.pop %v623
        %v625 = vmul.f32 %v620, 1.442695
        %v626 = vpow.pop %v625
        %v627 = vsub.f32 1.0, %v622
        %v628 = vsub.f32 1.0, %v624
        %v629 = vsub.f32 1.0, %v626
        %v630 = vmul.f32 %v622, %v622
        %v631 = vmul.f32 %v624, %v624
        %v632 = vmul.f32 %v626, %v626
        %v633 = vadd.f32 %v630, 1.0
        %v634 = vadd.f32 %v631, 1.0
        %v635 = vadd.f32 %v632, 1.0
        %v636 = vrcp.pop %v633
        %v637 = vmul.f32 %v627, %v636
        %v638 = vrcp.pop %v634
        %v639 = vmul.f32 %v628, %v638
        %v640 = vrcp.pop %v635
        %v641 = vmul.f32 %v629, %v640
        %s642 = scalar_lea.vmem %s2, 4
        %v643 = vld [vmem:[%s642] sm:$0xf]
        %s644 = scalar_lea.vmem %s3, 1
        %v645 = vld [vmem:[%s644] sm:$0x1]
        %v647 = vlaneseq
        %v648 = vshrl.u32 %v647, 7
        %v649 = vsub.s32 0, %v648
        %v650 = vrot.slane %v645, %v649
        %v653 = vsel %vm199, %v637, 0
        %v656 = vsel %vm199, %v639, 0
        %v659 = vsel %vm199, %v641, 0
        %v662 = vsel %vm365, %v643, 0
        %664 = vmatprep.subr.mxu0 0.0
        %665 = vmatpush1.msra.mxu0 %v662
        %666 = vmatprep.subr.mxu0 0.0
        %667 = vmatpush1.msra.mxu0 0.0
        %668 = vmatprep.subr.mxu0 0.0
        %669 = vmatpush1.msra.mxu0 0.0
        %670 = vmatprep.subr.mxu0 0.0
        %671 = vmatpush1.msra.mxu0 0.0
        %672 = vmatprep.subr.mxu0 0.0
        %673 = vmatpush1.msra.mxu0 0.0
        %674 = vmatprep.subr.mxu0 0.0
        %675 = vmatpush1.msra.mxu0 0.0
        %676 = vmatprep.subr.mxu0 0.0
        %677 = vmatpush1.msra.mxu0 0.0
        %678 = vmatprep.subr.mxu0 0.0
        %679 = vmatpush1.msra.mxu0 0.0
        %680 = vmatprep.subr.mxu0 0.0
        %681 = vmatpush1.msra.mxu0 0.0
        %682 = vmatprep.subr.mxu0 0.0
        %683 = vmatpush1.msra.mxu0 0.0
        %684 = vmatprep.subr.mxu0 0.0
        %685 = vmatpush1.msra.mxu0 0.0
        %686 = vmatprep.subr.mxu0 0.0
        %687 = vmatpush1.msra.mxu0 0.0
        %688 = vmatprep.subr.mxu0 0.0
        %689 = vmatpush1.msra.mxu0 0.0
        %690 = vmatprep.subr.mxu0 0.0
        %691 = vmatpush1.msra.mxu0 0.0
        %692 = vmatprep.subr.mxu0 0.0
        %693 = vmatpush1.msra.mxu0 0.0
        %694 = vmatprep.subr.mxu0 0.0
        %695 = vmatpush1.msra.mxu0 0.0
        %696 = vmatprep.subr.mxu0 0.0
        %697 = vmatpush1.msra.mxu0 0.0
        %698 = vmatprep.subr.mxu0 0.0
        %699 = vmatpush1.msra.mxu0 0.0
        %700 = vmatprep.subr.mxu0 0.0
        %701 = vmatpush1.msra.mxu0 0.0
        %702 = vmatprep.subr.mxu0 0.0
        %703 = vmatpush1.msra.mxu0 0.0
        %704 = vmatprep.subr.mxu0 0.0
        %705 = vmatpush1.msra.mxu0 0.0
        %706 = vmatprep.subr.mxu0 0.0
        %707 = vmatpush1.msra.mxu0 0.0
        %708 = vmatprep.subr.mxu0 0.0
        %709 = vmatpush1.msra.mxu0 0.0
        %710 = vmatprep.subr.mxu0 0.0
        %711 = vmatpush1.msra.mxu0 0.0
        %712 = vmatprep.subr.mxu0 0.0
        %713 = vmatpush1.msra.mxu0 0.0
        %714 = vmatprep.subr.mxu0 0.0
        %715 = vmatpush1.msra.mxu0 0.0
        %716 = vmatprep.subr.mxu0 0.0
        %717 = vmatpush1.msra.mxu0 0.0
        %718 = vmatprep.subr.mxu0 0.0
        %719 = vmatpush1.msra.mxu0 0.0
        %720 = vmatprep.subr.mxu0 0.0
        %721 = vmatpush1.msra.mxu0 0.0
        %722 = vmatprep.subr.mxu0 0.0
        %723 = vmatpush1.msra.mxu0 0.0
        %724 = vmatprep.subr.mxu0 0.0
        %725 = vmatpush1.msra.mxu0 0.0
        %726 = vmatprep.subr.mxu0 0.0
        %727 = vmatpush1.msra.mxu0 0.0
        %728 = vmatprep.mubr.f32.mxu0 0.0
        %729 = vmatmul.mubr.f32.gmra.mrb[0].mxu0 %v653
        %v730 = vpop.f32.mrb[0].mxu0
        %v731 = vadd.f32 %v650, %v730
        %v732 = vpop.f32.mrb[0].mxu0
        %733 = vmatprep.mubr.f32.mxu0 0.0
        %734 = vmatmul.mubr.f32.gmra.mrb[0].mxu0 %v656
        %v735 = vpop.f32.mrb[0].mxu0
        %v736 = vadd.f32 %v650, %v735
        %v737 = vpop.f32.mrb[0].mxu0
        %738 = vmatprep.mubr.f32.mxu0 0.0
        %739 = vmatmul.mubr.f32.gmra.mrb[0].mxu0 %v659
        %v740 = vpop.f32.mrb[0].mxu0
        %v741 = vadd.f32 %v650, %v740
        %v742 = vpop.f32.mrb[0].mxu0
        %743 = vdwg.mxu0
        %v744 = vadd.f32 %v731, %v506
        %v745 = vadd.f32 %v736, %v508
        %v746 = vadd.f32 %v741, %v513
        %747 = vst.msk [vmem:[#allocation2] sm:$0xff] %vm199, %v744
        %748 = vst.msk [vmem:[#allocation2 + $0x8] sm:$0xff] %vm199, %v745
        %749 = vst.msk [vmem:[#allocation2 + $0x10] sm:$0xff] %vm199, %v746
        %vm752 = vcmask 1042432
        %v753 = vrot.slane %v736, 5
        %v754 = vrot.slane %v741, 5
        %v755 = vsel %vm752, %v753, %v754
        %756 = vrot.lane.b32.xlu0 %v755, 124
        %v757 = vpop.permute.xlu0 %756
        %759 = vxpose.xlu0.b32.start [1/16] %v757, 128
        %760 = vxpose.xlu0.b32.cont [2/16] 0.0, 128
        %761 = vxpose.xlu0.b32.cont [3/16] 0.0, 128
        %762 = vxpose.xlu0.b32.cont [4/16] 0.0, 128
        %763 = vxpose.xlu0.b32.cont [5/16] 0.0, 128
        %764 = vxpose.xlu0.b32.cont [6/16] 0.0, 128
        %765 = vxpose.xlu0.b32.cont [7/16] 0.0, 128
        %766 = vxpose.xlu0.b32.cont [8/16] 0.0, 128
        %767 = vxpose.xlu0.b32.cont [9/16] 0.0, 128
        %768 = vxpose.xlu0.b32.cont [10/16] 0.0, 128
        %769 = vxpose.xlu0.b32.cont [11/16] 0.0, 128
        %770 = vxpose.xlu0.b32.cont [12/16] 0.0, 128
        %771 = vxpose.xlu0.b32.cont [13/16] 0.0, 128
        %772 = vxpose.xlu0.b32.cont [14/16] 0.0, 128
        %773 = vxpose.xlu0.b32.cont [15/16] 0.0, 128
        %774 = vxpose.xlu0.b32.end [16/16] 0.0, 128
        %v775 = vpop.trf.xlu0
        %v776 = vpop.trf.xlu0
        %v777 = vpop.trf.xlu0
        %v778 = vpop.trf.xlu0
        %v779 = vpop.trf.xlu0
        %v780 = vpop.trf.xlu0
        %v781 = vpop.trf.xlu0
        %v782 = vpop.trf.xlu0
        %v783 = vpop.trf.xlu0
        %v784 = vpop.trf.xlu0
        %v785 = vpop.trf.xlu0
        %v786 = vpop.trf.xlu0
        %v787 = vpop.trf.xlu0
        %v788 = vpop.trf.xlu0
        %v789 = vpop.trf.xlu0
        %v790 = vpop.trf.xlu0
        %s791 = scalar_lea.vmem %s190, 8 [#allocation3]
        %792 = vst.msk [vmem:[%s791] sm:$0xff] %vm234, %v775
        %v793 = vld [vmem:[#allocation2] sm:$0xff]
        %v794 = vld [vmem:[#allocation2 + $0x8] sm:$0xff]
        %v795 = vld [vmem:[#allocation2 + $0x10] sm:$0xff]
        %v799 = vrot.slane %v793, 4
        %v800 = vrot.slane %v794, 4
        %v801 = vsel %vm365, %v799, %v800
        %v802 = vrot.slane %v795, 4
        %v803 = vsel %vm365, %v800, %v802
        %v808 = vsel %vm365, %v802, %v799
        %810 = vrot.lane.b32.xlu0 %v801, 4
        %v811 = vpop.permute.xlu0 %810
        %812 = vrot.lane.b32.xlu0 %v803, 4
        %v813 = vpop.permute.xlu0 %812
        %814 = vrot.lane.b32.xlu0 %v808, 4
        %v815 = vpop.permute.xlu0 %814
        %v819 = vsel %vm199, %v793, %v811
        %v820 = vsel %vm199, %v794, %v813
        %v821 = vsel %vm199, %v795, %v815
        %s822 = scalar_lea.vmem %s1, 16
        %v823 = vld [vmem:[%s822] sm:$0xff]
        %v825 = vsel %vm234, %v819, 0
        %v828 = vsel %vm234, %v820, 0
        %v831 = vsel %vm234, %v821, 0
        %833 = vmatprep.subr.mxu0 0.0
        %834 = vmatpush1.msra.mxu0 %v823
        %835 = vmatprep.subr.mxu0 0.0
        %836 = vmatpush1.msra.mxu0 0.0
        %837 = vmatprep.subr.mxu0 0.0
        %838 = vmatpush1.msra.mxu0 0.0
        %839 = vmatprep.subr.mxu0 0.0
        %840 = vmatpush1.msra.mxu0 0.0
        %841 = vmatprep.subr.mxu0 0.0
        %842 = vmatpush1.msra.mxu0 0.0
        %843 = vmatprep.subr.mxu0 0.0
        %844 = vmatpush1.msra.mxu0 0.0
        %845 = vmatprep.subr.mxu0 0.0
        %846 = vmatpush1.msra.mxu0 0.0
        %847 = vmatprep.subr.mxu0 0.0
        %848 = vmatpush1.msra.mxu0 0.0
        %849 = vmatprep.subr.mxu0 0.0
        %850 = vmatpush1.msra.mxu0 0.0
        %851 = vmatprep.subr.mxu0 0.0
        %852 = vmatpush1.msra.mxu0 0.0
        %853 = vmatprep.subr.mxu0 0.0
        %854 = vmatpush1.msra.mxu0 0.0
        %855 = vmatprep.subr.mxu0 0.0
        %856 = vmatpush1.msra.mxu0 0.0
        %857 = vmatprep.subr.mxu0 0.0
        %858 = vmatpush1.msra.mxu0 0.0
        %859 = vmatprep.subr.mxu0 0.0
        %860 = vmatpush1.msra.mxu0 0.0
        %861 = vmatprep.subr.mxu0 0.0
        %862 = vmatpush1.msra.mxu0 0.0
        %863 = vmatprep.subr.mxu0 0.0
        %864 = vmatpush1.msra.mxu0 0.0
        %865 = vmatprep.subr.mxu0 0.0
        %866 = vmatpush1.msra.mxu0 0.0
        %867 = vmatprep.subr.mxu0 0.0
        %868 = vmatpush1.msra.mxu0 0.0
        %869 = vmatprep.subr.mxu0 0.0
        %870 = vmatpush1.msra.mxu0 0.0
        %871 = vmatprep.subr.mxu0 0.0
        %872 = vmatpush1.msra.mxu0 0.0
        %873 = vmatprep.subr.mxu0 0.0
        %874 = vmatpush1.msra.mxu0 0.0
        %875 = vmatprep.subr.mxu0 0.0
        %876 = vmatpush1.msra.mxu0 0.0
        %877 = vmatprep.subr.mxu0 0.0
        %878 = vmatpush1.msra.mxu0 0.0
        %879 = vmatprep.subr.mxu0 0.0
        %880 = vmatpush1.msra.mxu0 0.0
        %881 = vmatprep.subr.mxu0 0.0
        %882 = vmatpush1.msra.mxu0 0.0
        %883 = vmatprep.subr.mxu0 0.0
        %884 = vmatpush1.msra.mxu0 0.0
        %885 = vmatprep.subr.mxu0 0.0
        %886 = vmatpush1.msra.mxu0 0.0
        %887 = vmatprep.subr.mxu0 0.0
        %888 = vmatpush1.msra.mxu0 0.0
        %889 = vmatprep.subr.mxu0 0.0
        %890 = vmatpush1.msra.mxu0 0.0
        %891 = vmatprep.subr.mxu0 0.0
        %892 = vmatpush1.msra.mxu0 0.0
        %893 = vmatprep.subr.mxu0 0.0
        %894 = vmatpush1.msra.mxu0 0.0
        %895 = vmatprep.subr.mxu0 0.0
        %896 = vmatpush1.msra.mxu0 0.0
        %897 = vmatprep.mubr.f32.mxu0 0.0
        %898 = vmatmul.mubr.f32.gmra.mrb[0].mxu0 %v825
        %v899 = vpop.f32.mrb[0].mxu0
        %v900 = vadd.f32 0.0, %v899
        %v901 = vpop.f32.mrb[0].mxu0
        %902 = vmatprep.mubr.f32.mxu0 0.0
        %903 = vmatmul.mubr.f32.gmra.mrb[0].mxu0 %v828
        %v904 = vpop.f32.mrb[0].mxu0
        %v905 = vadd.f32 0.0, %v904
        %v906 = vpop.f32.mrb[0].mxu0
        %907 = vmatprep.mubr.f32.mxu0 0.0
        %908 = vmatmul.mubr.f32.gmra.mrb[0].mxu0 %v831
        %v909 = vpop.f32.mrb[0].mxu0
        %v910 = vadd.f32 0.0, %v909
        %v911 = vpop.f32.mrb[0].mxu0
        %912 = vdwg.mxu0
        %v913 = vsub.f32 0.0, %v900
        %v914 = vsub.f32 0.0, %v905
        %v915 = vsub.f32 0.0, %v910
        %v916 = vmul.f32 %v913, 1.442695
        %v917 = vpow.pop %v916
        %v918 = vmul.f32 %v914, 1.442695
        %v919 = vpow.pop %v918
        %v920 = vmul.f32 %v915, 1.442695
        %v921 = vpow.pop %v920
        %v922 = vsub.f32 1.0, %v917
        %v923 = vsub.f32 1.0, %v919
        %v924 = vsub.f32 1.0, %v921
        %v925 = vmul.f32 %v917, %v917
        %v926 = vmul.f32 %v919, %v919
        %v927 = vmul.f32 %v921, %v921
        %v928 = vadd.f32 %v925, 1.0
        %v929 = vadd.f32 %v926, 1.0
        %v930 = vadd.f32 %v927, 1.0
        %v931 = vrcp.pop %v928
        %v932 = vmul.f32 %v922, %v931
        %v933 = vrcp.pop %v929
        %v934 = vmul.f32 %v923, %v933
        %v935 = vrcp.pop %v930
        %v936 = vmul.f32 %v924, %v935
        %s937 = scalar_lea.vmem %s2, 8
        %v938 = vld [vmem:[%s937] sm:$0xf]
        %s939 = scalar_lea.vmem %s3, 2
        %v940 = vld [vmem:[%s939] sm:$0x1]
        %v942 = vlaneseq
        %v943 = vshrl.u32 %v942, 7
        %v944 = vsub.s32 0, %v943
        %v945 = vrot.slane %v940, %v944
        %v948 = vsel %vm199, %v932, 0
        %v951 = vsel %vm199, %v934, 0
        %v954 = vsel %vm199, %v936, 0
        %v957 = vsel %vm365, %v938, 0
        %959 = vmatprep.subr.mxu0 0.0
        %960 = vmatpush1.msra.mxu0 %v957
        %961 = vmatprep.subr.mxu0 0.0
        %962 = vmatpush1.msra.mxu0 0.0
        %963 = vmatprep.subr.mxu0 0.0
        %964 = vmatpush1.msra.mxu0 0.0
        %965 = vmatprep.subr.mxu0 0.0
        %966 = vmatpush1.msra.mxu0 0.0
        %967 = vmatprep.subr.mxu0 0.0
        %968 = vmatpush1.msra.mxu0 0.0
        %969 = vmatprep.subr.mxu0 0.0
        %970 = vmatpush1.msra.mxu0 0.0
        %971 = vmatprep.subr.mxu0 0.0
        %972 = vmatpush1.msra.mxu0 0.0
        %973 = vmatprep.subr.mxu0 0.0
        %974 = vmatpush1.msra.mxu0 0.0
        %975 = vmatprep.subr.mxu0 0.0
        %976 = vmatpush1.msra.mxu0 0.0
        %977 = vmatprep.subr.mxu0 0.0
        %978 = vmatpush1.msra.mxu0 0.0
        %979 = vmatprep.subr.mxu0 0.0
        %980 = vmatpush1.msra.mxu0 0.0
        %981 = vmatprep.subr.mxu0 0.0
        %982 = vmatpush1.msra.mxu0 0.0
        %983 = vmatprep.subr.mxu0 0.0
        %984 = vmatpush1.msra.mxu0 0.0
        %985 = vmatprep.subr.mxu0 0.0
        %986 = vmatpush1.msra.mxu0 0.0
        %987 = vmatprep.subr.mxu0 0.0
        %988 = vmatpush1.msra.mxu0 0.0
        %989 = vmatprep.subr.mxu0 0.0
        %990 = vmatpush1.msra.mxu0 0.0
        %991 = vmatprep.subr.mxu0 0.0
        %992 = vmatpush1.msra.mxu0 0.0
        %993 = vmatprep.subr.mxu0 0.0
        %994 = vmatpush1.msra.mxu0 0.0
        %995 = vmatprep.subr.mxu0 0.0
        %996 = vmatpush1.msra.mxu0 0.0
        %997 = vmatprep.subr.mxu0 0.0
        %998 = vmatpush1.msra.mxu0 0.0
        %999 = vmatprep.subr.mxu0 0.0
        %1000 = vmatpush1.msra.mxu0 0.0
        %1001 = vmatprep.subr.mxu0 0.0
        %1002 = vmatpush1.msra.mxu0 0.0
        %1003 = vmatprep.subr.mxu0 0.0
        %1004 = vmatpush1.msra.mxu0 0.0
        %1005 = vmatprep.subr.mxu0 0.0
        %1006 = vmatpush1.msra.mxu0 0.0
        %1007 = vmatprep.subr.mxu0 0.0
        %1008 = vmatpush1.msra.mxu0 0.0
        %1009 = vmatprep.subr.mxu0 0.0
        %1010 = vmatpush1.msra.mxu0 0.0
        %1011 = vmatprep.subr.mxu0 0.0
        %1012 = vmatpush1.msra.mxu0 0.0
        %1013 = vmatprep.subr.mxu0 0.0
        %1014 = vmatpush1.msra.mxu0 0.0
        %1015 = vmatprep.subr.mxu0 0.0
        %1016 = vmatpush1.msra.mxu0 0.0
        %1017 = vmatprep.subr.mxu0 0.0
        %1018 = vmatpush1.msra.mxu0 0.0
        %1019 = vmatprep.subr.mxu0 0.0
        %1020 = vmatpush1.msra.mxu0 0.0
        %1021 = vmatprep.subr.mxu0 0.0
        %1022 = vmatpush1.msra.mxu0 0.0
        %1023 = vmatprep.mubr.f32.mxu0 0.0
        %1024 = vmatmul.mubr.f32.gmra.mrb[0].mxu0 %v948
        %v1025 = vpop.f32.mrb[0].mxu0
        %v1026 = vadd.f32 %v945, %v1025
        %v1027 = vpop.f32.mrb[0].mxu0
        %1028 = vmatprep.mubr.f32.mxu0 0.0
        %1029 = vmatmul.mubr.f32.gmra.mrb[0].mxu0 %v951
        %v1030 = vpop.f32.mrb[0].mxu0
        %v1031 = vadd.f32 %v945, %v1030
        %v1032 = vpop.f32.mrb[0].mxu0
        %1033 = vmatprep.mubr.f32.mxu0 0.0
        %1034 = vmatmul.mubr.f32.gmra.mrb[0].mxu0 %v954
        %v1035 = vpop.f32.mrb[0].mxu0
        %v1036 = vadd.f32 %v945, %v1035
        %v1037 = vpop.f32.mrb[0].mxu0
        %1038 = vdwg.mxu0
        %v1039 = vadd.f32 %v1026, %v801
        %v1040 = vadd.f32 %v1031, %v803
        %v1041 = vadd.f32 %v1036, %v808
        %1042 = vst.msk [vmem:[#allocation2] sm:$0xff] %vm199, %v1039
        %1043 = vst.msk [vmem:[#allocation2 + $0x8] sm:$0xff] %vm199, %v1040
        %1044 = vst.msk [vmem:[#allocation2 + $0x10] sm:$0xff] %vm199, %v1041
        %v1047 = vrot.slane %v1031, 1
        %v1048 = vrot.slane %v1036, 1
        %v1049 = vsel %vm209, %v1047, %v1048
        %1050 = vrot.lane.b32.xlu0 %v1049, 124
        %v1051 = vpop.permute.xlu0 %1050
        %1053 = vxpose.xlu0.b32.start [1/16] %v1051, 128
        %1054 = vxpose.xlu0.b32.cont [2/16] 0.0, 128
        %1055 = vxpose.xlu0.b32.cont [3/16] 0.0, 128
        %1056 = vxpose.xlu0.b32.cont [4/16] 0.0, 128
        %1057 = vxpose.xlu0.b32.cont [5/16] 0.0, 128
        %1058 = vxpose.xlu0.b32.cont [6/16] 0.0, 128
        %1059 = vxpose.xlu0.b32.cont [7/16] 0.0, 128
        %1060 = vxpose.xlu0.b32.cont [8/16] 0.0, 128
        %1061 = vxpose.xlu0.b32.cont [9/16] 0.0, 128
        %1062 = vxpose.xlu0.b32.cont [10/16] 0.0, 128
        %1063 = vxpose.xlu0.b32.cont [11/16] 0.0, 128
        %1064 = vxpose.xlu0.b32.cont [12/16] 0.0, 128
        %1065 = vxpose.xlu0.b32.cont [13/16] 0.0, 128
        %1066 = vxpose.xlu0.b32.cont [14/16] 0.0, 128
        %1067 = vxpose.xlu0.b32.cont [15/16] 0.0, 128
        %1068 = vxpose.xlu0.b32.end [16/16] 0.0, 128
        %v1069 = vpop.trf.xlu0
        %v1070 = vpop.trf.xlu0
        %v1071 = vpop.trf.xlu0
        %v1072 = vpop.trf.xlu0
        %v1073 = vpop.trf.xlu0
        %v1074 = vpop.trf.xlu0
        %v1075 = vpop.trf.xlu0
        %v1076 = vpop.trf.xlu0
        %v1077 = vpop.trf.xlu0
        %v1078 = vpop.trf.xlu0
        %v1079 = vpop.trf.xlu0
        %v1080 = vpop.trf.xlu0
        %v1081 = vpop.trf.xlu0
        %v1082 = vpop.trf.xlu0
        %v1083 = vpop.trf.xlu0
        %v1084 = vpop.trf.xlu0
        %s1085 = scalar_lea.vmem %s190, 16 [#allocation3]
        %1086 = vst.msk [vmem:[%s1085] sm:$0xff] %vm234, %v1069
        %v1087 = vld [vmem:[#allocation2] sm:$0xff]
        %v1088 = vld [vmem:[#allocation2 + $0x8] sm:$0xff]
        %v1089 = vld [vmem:[#allocation2 + $0x10] sm:$0xff]
        %v1093 = vrot.slane %v1087, 1
        %v1094 = vrot.slane %v1088, 1
        %v1095 = vsel %vm209, %v1093, %v1094
        %v1096 = vrot.slane %v1089, 1
        %v1097 = vsel %vm209, %v1094, %v1096
        %v1102 = vsel %vm209, %v1096, %v1093
        %1104 = vrot.lane.b32.xlu0 %v1095, 4
        %v1105 = vpop.permute.xlu0 %1104
        %1106 = vrot.lane.b32.xlu0 %v1097, 4
        %v1107 = vpop.permute.xlu0 %1106
        %1108 = vrot.lane.b32.xlu0 %v1102, 4
        %v1109 = vpop.permute.xlu0 %1108
        %v1113 = vsel %vm199, %v1087, %v1105
        %v1114 = vsel %vm199, %v1088, %v1107
        %v1115 = vsel %vm199, %v1089, %v1109
        %s1116 = scalar_lea.vmem %s1, 24
        %v1117 = vld [vmem:[%s1116] sm:$0xff]
        %v1119 = vsel %vm234, %v1113, 0
        %v1122 = vsel %vm234, %v1114, 0
        %v1125 = vsel %vm234, %v1115, 0
        %1127 = vmatprep.subr.mxu0 0.0
        %1128 = vmatpush1.msra.mxu0 %v1117
        %1129 = vmatprep.subr.mxu0 0.0
        %1130 = vmatpush1.msra.mxu0 0.0
        %1131 = vmatprep.subr.mxu0 0.0
        %1132 = vmatpush1.msra.mxu0 0.0
        %1133 = vmatprep.subr.mxu0 0.0
        %1134 = vmatpush1.msra.mxu0 0.0
        %1135 = vmatprep.subr.mxu0 0.0
        %1136 = vmatpush1.msra.mxu0 0.0
        %1137 = vmatprep.subr.mxu0 0.0
        %1138 = vmatpush1.msra.mxu0 0.0
        %1139 = vmatprep.subr.mxu0 0.0
        %1140 = vmatpush1.msra.mxu0 0.0
        %1141 = vmatprep.subr.mxu0 0.0
        %1142 = vmatpush1.msra.mxu0 0.0
        %1143 = vmatprep.subr.mxu0 0.0
        %1144 = vmatpush1.msra.mxu0 0.0
        %1145 = vmatprep.subr.mxu0 0.0
        %1146 = vmatpush1.msra.mxu0 0.0
        %1147 = vmatprep.subr.mxu0 0.0
        %1148 = vmatpush1.msra.mxu0 0.0
        %1149 = vmatprep.subr.mxu0 0.0
        %1150 = vmatpush1.msra.mxu0 0.0
        %1151 = vmatprep.subr.mxu0 0.0
        %1152 = vmatpush1.msra.mxu0 0.0
        %1153 = vmatprep.subr.mxu0 0.0
        %1154 = vmatpush1.msra.mxu0 0.0
        %1155 = vmatprep.subr.mxu0 0.0
        %1156 = vmatpush1.msra.mxu0 0.0
        %1157 = vmatprep.subr.mxu0 0.0
        %1158 = vmatpush1.msra.mxu0 0.0
        %1159 = vmatprep.subr.mxu0 0.0
        %1160 = vmatpush1.msra.mxu0 0.0
        %1161 = vmatprep.subr.mxu0 0.0
        %1162 = vmatpush1.msra.mxu0 0.0
        %1163 = vmatprep.subr.mxu0 0.0
        %1164 = vmatpush1.msra.mxu0 0.0
        %1165 = vmatprep.subr.mxu0 0.0
        %1166 = vmatpush1.msra.mxu0 0.0
        %1167 = vmatprep.subr.mxu0 0.0
        %1168 = vmatpush1.msra.mxu0 0.0
        %1169 = vmatprep.subr.mxu0 0.0
        %1170 = vmatpush1.msra.mxu0 0.0
        %1171 = vmatprep.subr.mxu0 0.0
        %1172 = vmatpush1.msra.mxu0 0.0
        %1173 = vmatprep.subr.mxu0 0.0
        %1174 = vmatpush1.msra.mxu0 0.0
        %1175 = vmatprep.subr.mxu0 0.0
        %1176 = vmatpush1.msra.mxu0 0.0
        %1177 = vmatprep.subr.mxu0 0.0
        %1178 = vmatpush1.msra.mxu0 0.0
        %1179 = vmatprep.subr.mxu0 0.0
        %1180 = vmatpush1.msra.mxu0 0.0
        %1181 = vmatprep.subr.mxu0 0.0
        %1182 = vmatpush1.msra.mxu0 0.0
        %1183 = vmatprep.subr.mxu0 0.0
        %1184 = vmatpush1.msra.mxu0 0.0
        %1185 = vmatprep.subr.mxu0 0.0
        %1186 = vmatpush1.msra.mxu0 0.0
        %1187 = vmatprep.subr.mxu0 0.0
        %1188 = vmatpush1.msra.mxu0 0.0
        %1189 = vmatprep.subr.mxu0 0.0
        %1190 = vmatpush1.msra.mxu0 0.0
        %1191 = vmatprep.mubr.f32.mxu0 0.0
        %1192 = vmatmul.mubr.f32.gmra.mrb[0].mxu0 %v1119
        %v1193 = vpop.f32.mrb[0].mxu0
        %v1194 = vadd.f32 0.0, %v1193
        %v1195 = vpop.f32.mrb[0].mxu0
        %1196 = vmatprep.mubr.f32.mxu0 0.0
        %1197 = vmatmul.mubr.f32.gmra.mrb[0].mxu0 %v1122
        %v1198 = vpop.f32.mrb[0].mxu0
        %v1199 = vadd.f32 0.0, %v1198
        %v1200 = vpop.f32.mrb[0].mxu0
        %1201 = vmatprep.mubr.f32.mxu0 0.0
        %1202 = vmatmul.mubr.f32.gmra.mrb[0].mxu0 %v1125
        %v1203 = vpop.f32.mrb[0].mxu0
        %v1204 = vadd.f32 0.0, %v1203
        %v1205 = vpop.f32.mrb[0].mxu0
        %1206 = vdwg.mxu0
        %v1207 = vsub.f32 0.0, %v1194
        %v1208 = vsub.f32 0.0, %v1199
        %v1209 = vsub.f32 0.0, %v1204
        %v1210 = vmul.f32 %v1207, 1.442695
        %v1211 = vpow.pop %v1210
        %v1212 = vmul.f32 %v1208, 1.442695
        %v1213 = vpow.pop %v1212
        %v1214 = vmul.f32 %v1209, 1.442695
        %v1215 = vpow.pop %v1214
        %v1216 = vsub.f32 1.0, %v1211
        %v1217 = vsub.f32 1.0, %v1213
        %v1218 = vsub.f32 1.0, %v1215
        %v1219 = vmul.f32 %v1211, %v1211
        %v1220 = vmul.f32 %v1213, %v1213
        %v1221 = vmul.f32 %v1215, %v1215
        %v1222 = vadd.f32 %v1219, 1.0
        %v1223 = vadd.f32 %v1220, 1.0
        %v1224 = vadd.f32 %v1221, 1.0
        %v1225 = vrcp.pop %v1222
        %v1226 = vmul.f32 %v1216, %v1225
        %v1227 = vrcp.pop %v1223
        %v1228 = vmul.f32 %v1217, %v1227
        %v1229 = vrcp.pop %v1224
        %v1230 = vmul.f32 %v1218, %v1229
        %s1231 = scalar_lea.vmem %s2, 12
        %v1232 = vld [vmem:[%s1231] sm:$0xf]
        %s1233 = scalar_lea.vmem %s3, 3
        %v1234 = vld [vmem:[%s1233] sm:$0x1]
        %v1236 = vlaneseq
        %v1237 = vshrl.u32 %v1236, 7
        %v1238 = vsub.s32 0, %v1237
        %v1239 = vrot.slane %v1234, %v1238
        %v1242 = vsel %vm199, %v1226, 0
        %v1245 = vsel %vm199, %v1228, 0
        %v1248 = vsel %vm199, %v1230, 0
        %v1251 = vsel %vm365, %v1232, 0
        %1253 = vmatprep.subr.mxu0 0.0
        %1254 = vmatpush1.msra.mxu0 %v1251
        %1255 = vmatprep.subr.mxu0 0.0
        %1256 = vmatpush1.msra.mxu0 0.0
        %1257 = vmatprep.subr.mxu0 0.0
        %1258 = vmatpush1.msra.mxu0 0.0
        %1259 = vmatprep.subr.mxu0 0.0
        %1260 = vmatpush1.msra.mxu0 0.0
        %1261 = vmatprep.subr.mxu0 0.0
        %1262 = vmatpush1.msra.mxu0 0.0
        %1263 = vmatprep.subr.mxu0 0.0
        %1264 = vmatpush1.msra.mxu0 0.0
        %1265 = vmatprep.subr.mxu0 0.0
        %1266 = vmatpush1.msra.mxu0 0.0
        %1267 = vmatprep.subr.mxu0 0.0
        %1268 = vmatpush1.msra.mxu0 0.0
        %1269 = vmatprep.subr.mxu0 0.0
        %1270 = vmatpush1.msra.mxu0 0.0
        %1271 = vmatprep.subr.mxu0 0.0
        %1272 = vmatpush1.msra.mxu0 0.0
        %1273 = vmatprep.subr.mxu0 0.0
        %1274 = vmatpush1.msra.mxu0 0.0
        %1275 = vmatprep.subr.mxu0 0.0
        %1276 = vmatpush1.msra.mxu0 0.0
        %1277 = vmatprep.subr.mxu0 0.0
        %1278 = vmatpush1.msra.mxu0 0.0
        %1279 = vmatprep.subr.mxu0 0.0
        %1280 = vmatpush1.msra.mxu0 0.0
        %1281 = vmatprep.subr.mxu0 0.0
        %1282 = vmatpush1.msra.mxu0 0.0
        %1283 = vmatprep.subr.mxu0 0.0
        %1284 = vmatpush1.msra.mxu0 0.0
        %1285 = vmatprep.subr.mxu0 0.0
        %1286 = vmatpush1.msra.mxu0 0.0
        %1287 = vmatprep.subr.mxu0 0.0
        %1288 = vmatpush1.msra.mxu0 0.0
        %1289 = vmatprep.subr.mxu0 0.0
        %1290 = vmatpush1.msra.mxu0 0.0
        %1291 = vmatprep.subr.mxu0 0.0
        %1292 = vmatpush1.msra.mxu0 0.0
        %1293 = vmatprep.subr.mxu0 0.0
        %1294 = vmatpush1.msra.mxu0 0.0
        %1295 = vmatprep.subr.mxu0 0.0
        %1296 = vmatpush1.msra.mxu0 0.0
        %1297 = vmatprep.subr.mxu0 0.0
        %1298 = vmatpush1.msra.mxu0 0.0
        %1299 = vmatprep.subr.mxu0 0.0
        %1300 = vmatpush1.msra.mxu0 0.0
        %1301 = vmatprep.subr.mxu0 0.0
        %1302 = vmatpush1.msra.mxu0 0.0
        %1303 = vmatprep.subr.mxu0 0.0
        %1304 = vmatpush1.msra.mxu0 0.0
        %1305 = vmatprep.subr.mxu0 0.0
        %1306 = vmatpush1.msra.mxu0 0.0
        %1307 = vmatprep.subr.mxu0 0.0
        %1308 = vmatpush1.msra.mxu0 0.0
        %1309 = vmatprep.subr.mxu0 0.0
        %1310 = vmatpush1.msra.mxu0 0.0
        %1311 = vmatprep.subr.mxu0 0.0
        %1312 = vmatpush1.msra.mxu0 0.0
        %1313 = vmatprep.subr.mxu0 0.0
        %1314 = vmatpush1.msra.mxu0 0.0
        %1315 = vmatprep.subr.mxu0 0.0
        %1316 = vmatpush1.msra.mxu0 0.0
        %1317 = vmatprep.mubr.f32.mxu0 0.0
        %1318 = vmatmul.mubr.f32.gmra.mrb[0].mxu0 %v1242
        %v1319 = vpop.f32.mrb[0].mxu0
        %v1320 = vadd.f32 %v1239, %v1319
        %v1321 = vpop.f32.mrb[0].mxu0
        %1322 = vmatprep.mubr.f32.mxu0 0.0
        %1323 = vmatmul.mubr.f32.gmra.mrb[0].mxu0 %v1245
        %v1324 = vpop.f32.mrb[0].mxu0
        %v1325 = vadd.f32 %v1239, %v1324
        %v1326 = vpop.f32.mrb[0].mxu0
        %1327 = vmatprep.mubr.f32.mxu0 0.0
        %1328 = vmatmul.mubr.f32.gmra.mrb[0].mxu0 %v1248
        %v1329 = vpop.f32.mrb[0].mxu0
        %v1330 = vadd.f32 %v1239, %v1329
        %v1331 = vpop.f32.mrb[0].mxu0
        %1332 = vdwg.mxu0
        %v1333 = vadd.f32 %v1320, %v1095
        %v1334 = vadd.f32 %v1325, %v1097
        %v1335 = vadd.f32 %v1330, %v1102
        %1336 = vst.msk [vmem:[#allocation2] sm:$0xff] %vm199, %v1333
        %1337 = vst.msk [vmem:[#allocation2 + $0x8] sm:$0xff] %vm199, %v1334
        %1338 = vst.msk [vmem:[#allocation2 + $0x10] sm:$0xff] %vm199, %v1335
        %1340 = vrot.lane.b32.xlu0 %v1325, 124
        %v1341 = vpop.permute.xlu0 %1340
        %1343 = vxpose.xlu0.b32.start [1/16] %v1341, 128
        %1344 = vxpose.xlu0.b32.cont [2/16] 0.0, 128
        %1345 = vxpose.xlu0.b32.cont [3/16] 0.0, 128
        %1346 = vxpose.xlu0.b32.cont [4/16] 0.0, 128
        %1347 = vxpose.xlu0.b32.cont [5/16] 0.0, 128
        %1348 = vxpose.xlu0.b32.cont [6/16] 0.0, 128
        %1349 = vxpose.xlu0.b32.cont [7/16] 0.0, 128
        %1350 = vxpose.xlu0.b32.cont [8/16] 0.0, 128
        %1351 = vxpose.xlu0.b32.cont [9/16] 0.0, 128
        %1352 = vxpose.xlu0.b32.cont [10/16] 0.0, 128
        %1353 = vxpose.xlu0.b32.cont [11/16] 0.0, 128
        %1354 = vxpose.xlu0.b32.cont [12/16] 0.0, 128
        %1355 = vxpose.xlu0.b32.cont [13/16] 0.0, 128
        %1356 = vxpose.xlu0.b32.cont [14/16] 0.0, 128
        %1357 = vxpose.xlu0.b32.cont [15/16] 0.0, 128
        %1358 = vxpose.xlu0.b32.end [16/16] 0.0, 128
        %v1359 = vpop.trf.xlu0
        %v1360 = vpop.trf.xlu0
        %v1361 = vpop.trf.xlu0
        %v1362 = vpop.trf.xlu0
        %v1363 = vpop.trf.xlu0
        %v1364 = vpop.trf.xlu0
        %v1365 = vpop.trf.xlu0
        %v1366 = vpop.trf.xlu0
        %v1367 = vpop.trf.xlu0
        %v1368 = vpop.trf.xlu0
        %v1369 = vpop.trf.xlu0
        %v1370 = vpop.trf.xlu0
        %v1371 = vpop.trf.xlu0
        %v1372 = vpop.trf.xlu0
        %v1373 = vpop.trf.xlu0
        %v1374 = vpop.trf.xlu0
        %s1375 = scalar_lea.vmem %s190, 24 [#allocation3]
        %1376 = vst.msk [vmem:[%s1375] sm:$0xff] %vm234, %v1359
        %v1377 = vld [vmem:[#allocation2] sm:$0xff]
        %v1378 = vld [vmem:[#allocation2 + $0x8] sm:$0xff]
        %v1379 = vld [vmem:[#allocation2 + $0x10] sm:$0xff]
        %v1383 = vrot.slane %v1377, 2
        %v1384 = vrot.slane %v1378, 2
        %v1385 = vsel %vm503, %v1383, %v1384
        %v1386 = vrot.slane %v1379, 2
        %v1387 = vsel %vm503, %v1384, %v1386
        %v1392 = vsel %vm503, %v1386, %v1383
        %1394 = vrot.lane.b32.xlu0 %v1385, 4
        %v1395 = vpop.permute.xlu0 %1394
        %1396 = vrot.lane.b32.xlu0 %v1387, 4
        %v1397 = vpop.permute.xlu0 %1396
        %1398 = vrot.lane.b32.xlu0 %v1392, 4
        %v1399 = vpop.permute.xlu0 %1398
        %v1403 = vsel %vm199, %v1377, %v1395
        %v1404 = vsel %vm199, %v1378, %v1397
        %v1405 = vsel %vm199, %v1379, %v1399
        %s1406 = scalar_lea.vmem %s1, 32
        %v1407 = vld [vmem:[%s1406] sm:$0xff]
        %v1409 = vsel %vm234, %v1403, 0
        %v1412 = vsel %vm234, %v1404, 0
        %v1415 = vsel %vm234, %v1405, 0
        %1417 = vmatprep.subr.mxu0 0.0
        %1418 = vmatpush1.msra.mxu0 %v1407
        %1419 = vmatprep.subr.mxu0 0.0
        %1420 = vmatpush1.msra.mxu0 0.0
        %1421 = vmatprep.subr.mxu0 0.0
        %1422 = vmatpush1.msra.mxu0 0.0
        %1423 = vmatprep.subr.mxu0 0.0
        %1424 = vmatpush1.msra.mxu0 0.0
        %1425 = vmatprep.subr.mxu0 0.0
        %1426 = vmatpush1.msra.mxu0 0.0
        %1427 = vmatprep.subr.mxu0 0.0
        %1428 = vmatpush1.msra.mxu0 0.0
        %1429 = vmatprep.subr.mxu0 0.0
        %1430 = vmatpush1.msra.mxu0 0.0
        %1431 = vmatprep.subr.mxu0 0.0
        %1432 = vmatpush1.msra.mxu0 0.0
        %1433 = vmatprep.subr.mxu0 0.0
        %1434 = vmatpush1.msra.mxu0 0.0
        %1435 = vmatprep.subr.mxu0 0.0
        %1436 = vmatpush1.msra.mxu0 0.0
        %1437 = vmatprep.subr.mxu0 0.0
        %1438 = vmatpush1.msra.mxu0 0.0
        %1439 = vmatprep.subr.mxu0 0.0
        %1440 = vmatpush1.msra.mxu0 0.0
        %1441 = vmatprep.subr.mxu0 0.0
        %1442 = vmatpush1.msra.mxu0 0.0
        %1443 = vmatprep.subr.mxu0 0.0
        %1444 = vmatpush1.msra.mxu0 0.0
        %1445 = vmatprep.subr.mxu0 0.0
        %1446 = vmatpush1.msra.mxu0 0.0
        %1447 = vmatprep.subr.mxu0 0.0
        %1448 = vmatpush1.msra.mxu0 0.0
        %1449 = vmatprep.subr.mxu0 0.0
        %1450 = vmatpush1.msra.mxu0 0.0
        %1451 = vmatprep.subr.mxu0 0.0
        %1452 = vmatpush1.msra.mxu0 0.0
        %1453 = vmatprep.subr.mxu0 0.0
        %1454 = vmatpush1.msra.mxu0 0.0
        %1455 = vmatprep.subr.mxu0 0.0
        %1456 = vmatpush1.msra.mxu0 0.0
        %1457 = vmatprep.subr.mxu0 0.0
        %1458 = vmatpush1.msra.mxu0 0.0
        %1459 = vmatprep.subr.mxu0 0.0
        %1460 = vmatpush1.msra.mxu0 0.0
        %1461 = vmatprep.subr.mxu0 0.0
        %1462 = vmatpush1.msra.mxu0 0.0
        %1463 = vmatprep.subr.mxu0 0.0
        %1464 = vmatpush1.msra.mxu0 0.0
        %1465 = vmatprep.subr.mxu0 0.0
        %1466 = vmatpush1.msra.mxu0 0.0
        %1467 = vmatprep.subr.mxu0 0.0
        %1468 = vmatpush1.msra.mxu0 0.0
        %1469 = vmatprep.subr.mxu0 0.0
        %1470 = vmatpush1.msra.mxu0 0.0
        %1471 = vmatprep.subr.mxu0 0.0
        %1472 = vmatpush1.msra.mxu0 0.0
        %1473 = vmatprep.subr.mxu0 0.0
        %1474 = vmatpush1.msra.mxu0 0.0
        %1475 = vmatprep.subr.mxu0 0.0
        %1476 = vmatpush1.msra.mxu0 0.0
        %1477 = vmatprep.subr.mxu0 0.0
        %1478 = vmatpush1.msra.mxu0 0.0
        %1479 = vmatprep.subr.mxu0 0.0
        %1480 = vmatpush1.msra.mxu0 0.0
        %1481 = vmatprep.mubr.f32.mxu0 0.0
        %1482 = vmatmul.mubr.f32.gmra.mrb[0].mxu0 %v1409
        %v1483 = vpop.f32.mrb[0].mxu0
        %v1484 = vadd.f32 0.0, %v1483
        %v1485 = vpop.f32.mrb[0].mxu0
        %1486 = vmatprep.mubr.f32.mxu0 0.0
        %1487 = vmatmul.mubr.f32.gmra.mrb[0].mxu0 %v1412
        %v1488 = vpop.f32.mrb[0].mxu0
        %v1489 = vadd.f32 0.0, %v1488
        %v1490 = vpop.f32.mrb[0].mxu0
        %1491 = vmatprep.mubr.f32.mxu0 0.0
        %1492 = vmatmul.mubr.f32.gmra.mrb[0].mxu0 %v1415
        %v1493 = vpop.f32.mrb[0].mxu0
        %v1494 = vadd.f32 0.0, %v1493
        %v1495 = vpop.f32.mrb[0].mxu0
        %1496 = vdwg.mxu0
        %v1497 = vsub.f32 0.0, %v1484
        %v1498 = vsub.f32 0.0, %v1489
        %v1499 = vsub.f32 0.0, %v1494
        %v1500 = vmul.f32 %v1497, 1.442695
        %v1501 = vpow.pop %v1500
        %v1502 = vmul.f32 %v1498, 1.442695
        %v1503 = vpow.pop %v1502
        %v1504 = vmul.f32 %v1499, 1.442695
        %v1505 = vpow.pop %v1504
        %v1506 = vsub.f32 1.0, %v1501
        %v1507 = vsub.f32 1.0, %v1503
        %v1508 = vsub.f32 1.0, %v1505
        %v1509 = vmul.f32 %v1501, %v1501
        %v1510 = vmul.f32 %v1503, %v1503
        %v1511 = vmul.f32 %v1505, %v1505
        %v1512 = vadd.f32 %v1509, 1.0
        %v1513 = vadd.f32 %v1510, 1.0
        %v1514 = vadd.f32 %v1511, 1.0
        %v1515 = vrcp.pop %v1512
        %v1516 = vmul.f32 %v1506, %v1515
        %v1517 = vrcp.pop %v1513
        %v1518 = vmul.f32 %v1507, %v1517
        %v1519 = vrcp.pop %v1514
        %v1520 = vmul.f32 %v1508, %v1519
        %s1521 = scalar_lea.vmem %s2, 16
        %v1522 = vld [vmem:[%s1521] sm:$0xf]
        %s1523 = scalar_lea.vmem %s3, 4
        %v1524 = vld [vmem:[%s1523] sm:$0x1]
        %v1526 = vlaneseq
        %v1527 = vshrl.u32 %v1526, 7
        %v1528 = vsub.s32 0, %v1527
        %v1529 = vrot.slane %v1524, %v1528
        %v1532 = vsel %vm199, %v1516, 0
        %v1535 = vsel %vm199, %v1518, 0
        %v1538 = vsel %vm199, %v1520, 0
        %v1541 = vsel %vm365, %v1522, 0
        %1543 = vmatprep.subr.mxu0 0.0
        %1544 = vmatpush1.msra.mxu0 %v1541
        %1545 = vmatprep.subr.mxu0 0.0
        %1546 = vmatpush1.msra.mxu0 0.0
        %1547 = vmatprep.subr.mxu0 0.0
        %1548 = vmatpush1.msra.mxu0 0.0
        %1549 = vmatprep.subr.mxu0 0.0
        %1550 = vmatpush1.msra.mxu0 0.0
        %1551 = vmatprep.subr.mxu0 0.0
        %1552 = vmatpush1.msra.mxu0 0.0
        %1553 = vmatprep.subr.mxu0 0.0
        %1554 = vmatpush1.msra.mxu0 0.0
        %1555 = vmatprep.subr.mxu0 0.0
        %1556 = vmatpush1.msra.mxu0 0.0
        %1557 = vmatprep.subr.mxu0 0.0
        %1558 = vmatpush1.msra.mxu0 0.0
        %1559 = vmatprep.subr.mxu0 0.0
        %1560 = vmatpush1.msra.mxu0 0.0
        %1561 = vmatprep.subr.mxu0 0.0
        %1562 = vmatpush1.msra.mxu0 0.0
        %1563 = vmatprep.subr.mxu0 0.0
        %1564 = vmatpush1.msra.mxu0 0.0
        %1565 = vmatprep.subr.mxu0 0.0
        %1566 = vmatpush1.msra.mxu0 0.0
        %1567 = vmatprep.subr.mxu0 0.0
        %1568 = vmatpush1.msra.mxu0 0.0
        %1569 = vmatprep.subr.mxu0 0.0
        %1570 = vmatpush1.msra.mxu0 0.0
        %1571 = vmatprep.subr.mxu0 0.0
        %1572 = vmatpush1.msra.mxu0 0.0
        %1573 = vmatprep.subr.mxu0 0.0
        %1574 = vmatpush1.msra.mxu0 0.0
        %1575 = vmatprep.subr.mxu0 0.0
        %1576 = vmatpush1.msra.mxu0 0.0
        %1577 = vmatprep.subr.mxu0 0.0
        %1578 = vmatpush1.msra.mxu0 0.0
        %1579 = vmatprep.subr.mxu0 0.0
        %1580 = vmatpush1.msra.mxu0 0.0
        %1581 = vmatprep.subr.mxu0 0.0
        %1582 = vmatpush1.msra.mxu0 0.0
        %1583 = vmatprep.subr.mxu0 0.0
        %1584 = vmatpush1.msra.mxu0 0.0
        %1585 = vmatprep.subr.mxu0 0.0
        %1586 = vmatpush1.msra.mxu0 0.0
        %1587 = vmatprep.subr.mxu0 0.0
        %1588 = vmatpush1.msra.mxu0 0.0
        %1589 = vmatprep.subr.mxu0 0.0
        %1590 = vmatpush1.msra.mxu0 0.0
        %1591 = vmatprep.subr.mxu0 0.0
        %1592 = vmatpush1.msra.mxu0 0.0
        %1593 = vmatprep.subr.mxu0 0.0
        %1594 = vmatpush1.msra.mxu0 0.0
        %1595 = vmatprep.subr.mxu0 0.0
        %1596 = vmatpush1.msra.mxu0 0.0
        %1597 = vmatprep.subr.mxu0 0.0
        %1598 = vmatpush1.msra.mxu0 0.0
        %1599 = vmatprep.subr.mxu0 0.0
        %1600 = vmatpush1.msra.mxu0 0.0
        %1601 = vmatprep.subr.mxu0 0.0
        %1602 = vmatpush1.msra.mxu0 0.0
        %1603 = vmatprep.subr.mxu0 0.0
        %1604 = vmatpush1.msra.mxu0 0.0
        %1605 = vmatprep.subr.mxu0 0.0
        %1606 = vmatpush1.msra.mxu0 0.0
        %1607 = vmatprep.mubr.f32.mxu0 0.0
        %1608 = vmatmul.mubr.f32.gmra.mrb[0].mxu0 %v1532
        %v1609 = vpop.f32.mrb[0].mxu0
        %v1610 = vadd.f32 %v1529, %v1609
        %v1611 = vpop.f32.mrb[0].mxu0
        %1612 = vmatprep.mubr.f32.mxu0 0.0
        %1613 = vmatmul.mubr.f32.gmra.mrb[0].mxu0 %v1535
        %v1614 = vpop.f32.mrb[0].mxu0
        %v1615 = vadd.f32 %v1529, %v1614
        %v1616 = vpop.f32.mrb[0].mxu0
        %1617 = vmatprep.mubr.f32.mxu0 0.0
        %1618 = vmatmul.mubr.f32.gmra.mrb[0].mxu0 %v1538
        %v1619 = vpop.f32.mrb[0].mxu0
        %v1620 = vadd.f32 %v1529, %v1619
        %v1621 = vpop.f32.mrb[0].mxu0
        %1622 = vdwg.mxu0
        %v1623 = vadd.f32 %v1610, %v1385
        %v1624 = vadd.f32 %v1615, %v1387
        %v1625 = vadd.f32 %v1620, %v1392
        %1626 = vst.msk [vmem:[#allocation2] sm:$0xff] %vm199, %v1623
        %1627 = vst.msk [vmem:[#allocation2 + $0x8] sm:$0xff] %vm199, %v1624
        %1628 = vst.msk [vmem:[#allocation2 + $0x10] sm:$0xff] %vm199, %v1625
        %vm1631 = vcmask 1041408
        %v1632 = vrot.slane %v1610, 6
        %v1633 = vrot.slane %v1615, 6
        %v1634 = vsel %vm1631, %v1632, %v1633
        %1635 = vrot.lane.b32.xlu0 %v1634, 124
        %v1636 = vpop.permute.xlu0 %1635
        %1638 = vxpose.xlu0.b32.start [1/16] %v1636, 128
        %1639 = vxpose.xlu0.b32.cont [2/16] 0.0, 128
        %1640 = vxpose.xlu0.b32.cont [3/16] 0.0, 128
        %1641 = vxpose.xlu0.b32.cont [4/16] 0.0, 128
        %1642 = vxpose.xlu0.b32.cont [5/16] 0.0, 128
        %1643 = vxpose.xlu0.b32.cont [6/16] 0.0, 128
        %1644 = vxpose.xlu0.b32.cont [7/16] 0.0, 128
        %1645 = vxpose.xlu0.b32.cont [8/16] 0.0, 128
        %1646 = vxpose.xlu0.b32.cont [9/16] 0.0, 128
        %1647 = vxpose.xlu0.b32.cont [10/16] 0.0, 128
        %1648 = vxpose.xlu0.b32.cont [11/16] 0.0, 128
        %1649 = vxpose.xlu0.b32.cont [12/16] 0.0, 128
        %1650 = vxpose.xlu0.b32.cont [13/16] 0.0, 128
        %1651 = vxpose.xlu0.b32.cont [14/16] 0.0, 128
        %1652 = vxpose.xlu0.b32.cont [15/16] 0.0, 128
        %1653 = vxpose.xlu0.b32.end [16/16] 0.0, 128
        %v1654 = vpop.trf.xlu0
        %v1655 = vpop.trf.xlu0
        %v1656 = vpop.trf.xlu0
        %v1657 = vpop.trf.xlu0
        %v1658 = vpop.trf.xlu0
        %v1659 = vpop.trf.xlu0
        %v1660 = vpop.trf.xlu0
        %v1661 = vpop.trf.xlu0
        %v1662 = vpop.trf.xlu0
        %v1663 = vpop.trf.xlu0
        %v1664 = vpop.trf.xlu0
        %v1665 = vpop.trf.xlu0
        %v1666 = vpop.trf.xlu0
        %v1667 = vpop.trf.xlu0
        %v1668 = vpop.trf.xlu0
        %v1669 = vpop.trf.xlu0
        %s1670 = scalar_lea.vmem %s190, 32 [#allocation3]
        %1671 = vst.msk [vmem:[%s1670] sm:$0xff] %vm234, %v1654
        %v1672 = vld [vmem:[#allocation2] sm:$0xff]
        %v1673 = vld [vmem:[#allocation2 + $0x8] sm:$0xff]
        %v1674 = vld [vmem:[#allocation2 + $0x10] sm:$0xff]
        %v1678 = vrot.slane %v1672, 4
        %v1679 = vrot.slane %v1673, 4
        %v1680 = vsel %vm365, %v1678, %v1679
        %v1681 = vrot.slane %v1674, 4
        %v1682 = vsel %vm365, %v1679, %v1681
        %v1687 = vsel %vm365, %v1681, %v1678
        %1689 = vrot.lane.b32.xlu0 %v1680, 4
        %v1690 = vpop.permute.xlu0 %1689
        %1691 = vrot.lane.b32.xlu0 %v1682, 4
        %v1692 = vpop.permute.xlu0 %1691
        %1693 = vrot.lane.b32.xlu0 %v1687, 4
        %v1694 = vpop.permute.xlu0 %1693
        %v1698 = vsel %vm199, %v1672, %v1690
        %v1699 = vsel %vm199, %v1673, %v1692
        %v1700 = vsel %vm199, %v1674, %v1694
        %s1701 = scalar_lea.vmem %s1, 40
        %v1702 = vld [vmem:[%s1701] sm:$0xff]
        %v1704 = vsel %vm234, %v1698, 0
        %v1707 = vsel %vm234, %v1699, 0
        %v1710 = vsel %vm234, %v1700, 0
        %1712 = vmatprep.subr.mxu0 0.0
        %1713 = vmatpush1.msra.mxu0 %v1702
        %1714 = vmatprep.subr.mxu0 0.0
        %1715 = vmatpush1.msra.mxu0 0.0
        %1716 = vmatprep.subr.mxu0 0.0
        %1717 = vmatpush1.msra.mxu0 0.0
        %1718 = vmatprep.subr.mxu0 0.0
        %1719 = vmatpush1.msra.mxu0 0.0
        %1720 = vmatprep.subr.mxu0 0.0
        %1721 = vmatpush1.msra.mxu0 0.0
        %1722 = vmatprep.subr.mxu0 0.0
        %1723 = vmatpush1.msra.mxu0 0.0
        %1724 = vmatprep.subr.mxu0 0.0
        %1725 = vmatpush1.msra.mxu0 0.0
        %1726 = vmatprep.subr.mxu0 0.0
        %1727 = vmatpush1.msra.mxu0 0.0
        %1728 = vmatprep.subr.mxu0 0.0
        %1729 = vmatpush1.msra.mxu0 0.0
        %1730 = vmatprep.subr.mxu0 0.0
        %1731 = vmatpush1.msra.mxu0 0.0
        %1732 = vmatprep.subr.mxu0 0.0
        %1733 = vmatpush1.msra.mxu0 0.0
        %1734 = vmatprep.subr.mxu0 0.0
        %1735 = vmatpush1.msra.mxu0 0.0
        %1736 = vmatprep.subr.mxu0 0.0
        %1737 = vmatpush1.msra.mxu0 0.0
        %1738 = vmatprep.subr.mxu0 0.0
        %1739 = vmatpush1.msra.mxu0 0.0
        %1740 = vmatprep.subr.mxu0 0.0
        %1741 = vmatpush1.msra.mxu0 0.0
        %1742 = vmatprep.subr.mxu0 0.0
        %1743 = vmatpush1.msra.mxu0 0.0
        %1744 = vmatprep.subr.mxu0 0.0
        %1745 = vmatpush1.msra.mxu0 0.0
        %1746 = vmatprep.subr.mxu0 0.0
        %1747 = vmatpush1.msra.mxu0 0.0
        %1748 = vmatprep.subr.mxu0 0.0
        %1749 = vmatpush1.msra.mxu0 0.0
        %1750 = vmatprep.subr.mxu0 0.0
        %1751 = vmatpush1.msra.mxu0 0.0
        %1752 = vmatprep.subr.mxu0 0.0
        %1753 = vmatpush1.msra.mxu0 0.0
        %1754 = vmatprep.subr.mxu0 0.0
        %1755 = vmatpush1.msra.mxu0 0.0
        %1756 = vmatprep.subr.mxu0 0.0
        %1757 = vmatpush1.msra.mxu0 0.0
        %1758 = vmatprep.subr.mxu0 0.0
        %1759 = vmatpush1.msra.mxu0 0.0
        %1760 = vmatprep.subr.mxu0 0.0
        %1761 = vmatpush1.msra.mxu0 0.0
        %1762 = vmatprep.subr.mxu0 0.0
        %1763 = vmatpush1.msra.mxu0 0.0
        %1764 = vmatprep.subr.mxu0 0.0
        %1765 = vmatpush1.msra.mxu0 0.0
        %1766 = vmatprep.subr.mxu0 0.0
        %1767 = vmatpush1.msra.mxu0 0.0
        %1768 = vmatprep.subr.mxu0 0.0
        %1769 = vmatpush1.msra.mxu0 0.0
        %1770 = vmatprep.subr.mxu0 0.0
        %1771 = vmatpush1.msra.mxu0 0.0
        %1772 = vmatprep.subr.mxu0 0.0
        %1773 = vmatpush1.msra.mxu0 0.0
        %1774 = vmatprep.subr.mxu0 0.0
        %1775 = vmatpush1.msra.mxu0 0.0
        %1776 = vmatprep.mubr.f32.mxu0 0.0
        %1777 = vmatmul.mubr.f32.gmra.mrb[0].mxu0 %v1704
        %v1778 = vpop.f32.mrb[0].mxu0
        %v1779 = vadd.f32 0.0, %v1778
        %v1780 = vpop.f32.mrb[0].mxu0
        %1781 = vmatprep.mubr.f32.mxu0 0.0
        %1782 = vmatmul.mubr.f32.gmra.mrb[0].mxu0 %v1707
        %v1783 = vpop.f32.mrb[0].mxu0
        %v1784 = vadd.f32 0.0, %v1783
        %v1785 = vpop.f32.mrb[0].mxu0
        %1786 = vmatprep.mubr.f32.mxu0 0.0
        %1787 = vmatmul.mubr.f32.gmra.mrb[0].mxu0 %v1710
        %v1788 = vpop.f32.mrb[0].mxu0
        %v1789 = vadd.f32 0.0, %v1788
        %v1790 = vpop.f32.mrb[0].mxu0
        %1791 = vdwg.mxu0
        %v1792 = vsub.f32 0.0, %v1779
        %v1793 = vsub.f32 0.0, %v1784
        %v1794 = vsub.f32 0.0, %v1789
        %v1795 = vmul.f32 %v1792, 1.442695
        %v1796 = vpow.pop %v1795
        %v1797 = vmul.f32 %v1793, 1.442695
        %v1798 = vpow.pop %v1797
        %v1799 = vmul.f32 %v1794, 1.442695
        %v1800 = vpow.pop %v1799
        %v1801 = vsub.f32 1.0, %v1796
        %v1802 = vsub.f32 1.0, %v1798
        %v1803 = vsub.f32 1.0, %v1800
        %v1804 = vmul.f32 %v1796, %v1796
        %v1805 = vmul.f32 %v1798, %v1798
        %v1806 = vmul.f32 %v1800, %v1800
        %v1807 = vadd.f32 %v1804, 1.0
        %v1808 = vadd.f32 %v1805, 1.0
        %v1809 = vadd.f32 %v1806, 1.0
        %v1810 = vrcp.pop %v1807
        %v1811 = vmul.f32 %v1801, %v1810
        %v1812 = vrcp.pop %v1808
        %v1813 = vmul.f32 %v1802, %v1812
        %v1814 = vrcp.pop %v1809
        %v1815 = vmul.f32 %v1803, %v1814
        %s1816 = scalar_lea.vmem %s2, 20
        %v1817 = vld [vmem:[%s1816] sm:$0xf]
        %s1818 = scalar_lea.vmem %s3, 5
        %v1819 = vld [vmem:[%s1818] sm:$0x1]
        %v1821 = vlaneseq
        %v1822 = vshrl.u32 %v1821, 7
        %v1823 = vsub.s32 0, %v1822
        %v1824 = vrot.slane %v1819, %v1823
        %v1827 = vsel %vm199, %v1811, 0
        %v1830 = vsel %vm199, %v1813, 0
        %v1833 = vsel %vm199, %v1815, 0
        %v1836 = vsel %vm365, %v1817, 0
        %1838 = vmatprep.subr.mxu0 0.0
        %1839 = vmatpush1.msra.mxu0 %v1836
        %1840 = vmatprep.subr.mxu0 0.0
        %1841 = vmatpush1.msra.mxu0 0.0
        %1842 = vmatprep.subr.mxu0 0.0
        %1843 = vmatpush1.msra.mxu0 0.0
        %1844 = vmatprep.subr.mxu0 0.0
        %1845 = vmatpush1.msra.mxu0 0.0
        %1846 = vmatprep.subr.mxu0 0.0
        %1847 = vmatpush1.msra.mxu0 0.0
        %1848 = vmatprep.subr.mxu0 0.0
        %1849 = vmatpush1.msra.mxu0 0.0
        %1850 = vmatprep.subr.mxu0 0.0
        %1851 = vmatpush1.msra.mxu0 0.0
        %1852 = vmatprep.subr.mxu0 0.0
        %1853 = vmatpush1.msra.mxu0 0.0
        %1854 = vmatprep.subr.mxu0 0.0
        %1855 = vmatpush1.msra.mxu0 0.0
        %1856 = vmatprep.subr.mxu0 0.0
        %1857 = vmatpush1.msra.mxu0 0.0
        %1858 = vmatprep.subr.mxu0 0.0
        %1859 = vmatpush1.msra.mxu0 0.0
        %1860 = vmatprep.subr.mxu0 0.0
        %1861 = vmatpush1.msra.mxu0 0.0
        %1862 = vmatprep.subr.mxu0 0.0
        %1863 = vmatpush1.msra.mxu0 0.0
        %1864 = vmatprep.subr.mxu0 0.0
        %1865 = vmatpush1.msra.mxu0 0.0
        %1866 = vmatprep.subr.mxu0 0.0
        %1867 = vmatpush1.msra.mxu0 0.0
        %1868 = vmatprep.subr.mxu0 0.0
        %1869 = vmatpush1.msra.mxu0 0.0
        %1870 = vmatprep.subr.mxu0 0.0
        %1871 = vmatpush1.msra.mxu0 0.0
        %1872 = vmatprep.subr.mxu0 0.0
        %1873 = vmatpush1.msra.mxu0 0.0
        %1874 = vmatprep.subr.mxu0 0.0
        %1875 = vmatpush1.msra.mxu0 0.0
        %1876 = vmatprep.subr.mxu0 0.0
        %1877 = vmatpush1.msra.mxu0 0.0
        %1878 = vmatprep.subr.mxu0 0.0
        %1879 = vmatpush1.msra.mxu0 0.0
        %1880 = vmatprep.subr.mxu0 0.0
        %1881 = vmatpush1.msra.mxu0 0.0
        %1882 = vmatprep.subr.mxu0 0.0
        %1883 = vmatpush1.msra.mxu0 0.0
        %1884 = vmatprep.subr.mxu0 0.0
        %1885 = vmatpush1.msra.mxu0 0.0
        %1886 = vmatprep.subr.mxu0 0.0
        %1887 = vmatpush1.msra.mxu0 0.0
        %1888 = vmatprep.subr.mxu0 0.0
        %1889 = vmatpush1.msra.mxu0 0.0
        %1890 = vmatprep.subr.mxu0 0.0
        %1891 = vmatpush1.msra.mxu0 0.0
        %1892 = vmatprep.subr.mxu0 0.0
        %1893 = vmatpush1.msra.mxu0 0.0
        %1894 = vmatprep.subr.mxu0 0.0
        %1895 = vmatpush1.msra.mxu0 0.0
        %1896 = vmatprep.subr.mxu0 0.0
        %1897 = vmatpush1.msra.mxu0 0.0
        %1898 = vmatprep.subr.mxu0 0.0
        %1899 = vmatpush1.msra.mxu0 0.0
        %1900 = vmatprep.subr.mxu0 0.0
        %1901 = vmatpush1.msra.mxu0 0.0
        %1902 = vmatprep.mubr.f32.mxu0 0.0
        %1903 = vmatmul.mubr.f32.gmra.mrb[0].mxu0 %v1827
        %v1904 = vpop.f32.mrb[0].mxu0
        %v1905 = vadd.f32 %v1824, %v1904
        %v1906 = vpop.f32.mrb[0].mxu0
        %1907 = vmatprep.mubr.f32.mxu0 0.0
        %1908 = vmatmul.mubr.f32.gmra.mrb[0].mxu0 %v1830
        %v1909 = vpop.f32.mrb[0].mxu0
        %v1910 = vadd.f32 %v1824, %v1909
        %v1911 = vpop.f32.mrb[0].mxu0
        %1912 = vmatprep.mubr.f32.mxu0 0.0
        %1913 = vmatmul.mubr.f32.gmra.mrb[0].mxu0 %v1833
        %v1914 = vpop.f32.mrb[0].mxu0
        %v1915 = vadd.f32 %v1824, %v1914
        %v1916 = vpop.f32.mrb[0].mxu0
        %1917 = vdwg.mxu0
        %v1918 = vadd.f32 %v1905, %v1680
        %v1919 = vadd.f32 %v1910, %v1682
        %v1920 = vadd.f32 %v1915, %v1687
        %1921 = vst.msk [vmem:[#allocation2] sm:$0xff] %vm199, %v1918
        %1922 = vst.msk [vmem:[#allocation2 + $0x8] sm:$0xff] %vm199, %v1919
        %1923 = vst.msk [vmem:[#allocation2 + $0x10] sm:$0xff] %vm199, %v1920
        %v1926 = vrot.slane %v1905, 2
        %v1927 = vrot.slane %v1910, 2
        %v1928 = vsel %vm503, %v1926, %v1927
        %1929 = vrot.lane.b32.xlu0 %v1928, 124
        %v1930 = vpop.permute.xlu0 %1929
        %1932 = vxpose.xlu0.b32.start [1/16] %v1930, 128
        %1933 = vxpose.xlu0.b32.cont [2/16] 0.0, 128
        %1934 = vxpose.xlu0.b32.cont [3/16] 0.0, 128
        %1935 = vxpose.xlu0.b32.cont [4/16] 0.0, 128
        %1936 = vxpose.xlu0.b32.cont [5/16] 0.0, 128
        %1937 = vxpose.xlu0.b32.cont [6/16] 0.0, 128
        %1938 = vxpose.xlu0.b32.cont [7/16] 0.0, 128
        %1939 = vxpose.xlu0.b32.cont [8/16] 0.0, 128
        %1940 = vxpose.xlu0.b32.cont [9/16] 0.0, 128
        %1941 = vxpose.xlu0.b32.cont [10/16] 0.0, 128
        %1942 = vxpose.xlu0.b32.cont [11/16] 0.0, 128
        %1943 = vxpose.xlu0.b32.cont [12/16] 0.0, 128
        %1944 = vxpose.xlu0.b32.cont [13/16] 0.0, 128
        %1945 = vxpose.xlu0.b32.cont [14/16] 0.0, 128
        %1946 = vxpose.xlu0.b32.cont [15/16] 0.0, 128
        %1947 = vxpose.xlu0.b32.end [16/16] 0.0, 128
        %v1948 = vpop.trf.xlu0
        %v1949 = vpop.trf.xlu0
        %v1950 = vpop.trf.xlu0
        %v1951 = vpop.trf.xlu0
        %v1952 = vpop.trf.xlu0
        %v1953 = vpop.trf.xlu0
        %v1954 = vpop.trf.xlu0
        %v1955 = vpop.trf.xlu0
        %v1956 = vpop.trf.xlu0
        %v1957 = vpop.trf.xlu0
        %v1958 = vpop.trf.xlu0
        %v1959 = vpop.trf.xlu0
        %v1960 = vpop.trf.xlu0
        %v1961 = vpop.trf.xlu0
        %v1962 = vpop.trf.xlu0
        %v1963 = vpop.trf.xlu0
        %s1964 = scalar_lea.vmem %s190, 40 [#allocation3]
        %1965 = vst.msk [vmem:[%s1964] sm:$0xff] %vm234, %v1948
        %s1966 = sand.u32 %s115, 1
        %s1967 = scalar_lea.sflag [#allocation4], %s1966
        %s1968 = sand.u32 %s115, 1
        %s1969 = smul.addr %s1968, 48
        %s1970 = scalar_lea.vmem [#allocation3], %s1969
        // Predicated region
        $region37: #{tpu_custom_call.1} parent=35 // pred_check
          %p1971 = pneg %p125
        $region38: #{tpu_custom_call.1} parent=35 // pred_check_branch
          %1973 = sbr.rel (%p1971) target = $region40
        $region39: #{tpu_custom_call.1} parent=35 // pred_region
          %s1975 = ssub.s32 768, 768
          %1976 = vsyncadd %s1967, %s1975
          %s1977 = smul.addr %s18, 128
          %s1978 = scalar_lea.hbm %s4, %s1977
          %s1979 = sshll.u32 %s1970, 4
          %s1980 = int_to_ptr.vmem [resolvable:$true] %s1979
          %1985 = dma.vmem_to_hbm [thread:$0]  %s1980, 768, %s1978, %s1967, 128, 256, 8
        $region40: #{tpu_custom_call.1} parent=35 // pred_fallthru
          _
      $region36: #{tpu_custom_call.1} parent=5 // pred_fallthru
        _
      %p1986 = scmp.le.s32.totalorder 2, %s13
      // Predicated region
      $region41: #{tpu_custom_call.1} parent=5 // pred_check
        %p1987 = pneg %p1986
      $region42: #{tpu_custom_call.1} parent=5 // pred_check_branch
        %1989 = sbr.rel (%p1987) target = $region44
      $region43: #{tpu_custom_call.1} parent=5 // pred_region
        %s1990 = ssub.s32 %s13, 2
        // Predicated region
        $region45: #{tpu_custom_call.1} parent=43 // pred_check
          %p1991 = pneg %p131
        $region46: #{tpu_custom_call.1} parent=43 // pred_check_branch
          %1993 = sbr.rel (%p1991) target = $region48
        $region47: #{tpu_custom_call.1} parent=43 // pred_region
          %s1994 = sand.u32 %s116, 1
          %s1995 = scalar_lea.sflag [#allocation4], %s1994
          %s1996 = sand.u32 %s116, 1
          %s1997 = smul.addr %s1996, 48
          %s1998 = scalar_lea.vmem [#allocation3], %s1997
          %1999 = dma.done %s1995, 768
        $region48: #{tpu_custom_call.1} parent=43 // pred_fallthru
          _
      $region44: #{tpu_custom_call.1} parent=5 // pred_fallthru
        _
    $region6: #{tpu_custom_call.1} parent=1 // loop_footer
      %s17 = sadd.s32 1, %s13
    $region7: #{tpu_custom_call.1} parent=1 // loop_footer_branch
      %12 = sbr.rel target = $region3
    $region8: #{tpu_custom_call.1} parent=1 // loop_exit
      _
    %2000 = vsyncpa [#allocation4], 1
    %s2001 = scalar_lea.sflag [#allocation4], 1
    %2002 = vsyncpa %s2001, 1

</llo_original>
